<compile_context>
chip_gen: v7x
topology: tpu7x:2x2x1
jax: 0.10.0
libtpu: 0.0.40
codegen_flags: <defaults>
</compile_context>

<pallas_src>
import jax
import jax.numpy as jnp
from jax import lax
from jax.experimental import pallas as pl
from jax.experimental.pallas import tpu as pltpu


# ----------------------------- model dimensions -----------------------------
B = 2        # batch size
S = 8        # sequence length
C = 10       # label_alphabet_size (output_dim)
W = 32       # wordrep.total_size
E = 16       # HP_label_embed_dim
D = 32       # d_architectures
F = 64       # HP_dim_feedforward
VOCAB = 50
THRESHOLD = 0.7     # data.HP_threshold
NEG_INF = -1e9

R = B * S            # flattened token rows (both batch elements)
R2 = 2 * R           # row-stacked attention rows (word stream + label stream)

# ----------------------------- aux / output layout ---------------------------
AUX_ROWS = R + R2    # rows 0:R   -> [word_represent | mask | pad]
AUX_COLS = 64        # rows R:R+R2, cols 0:R2 -> additive attention mask
OUT_LANES = 128      # single lane-dense output slab
LANE_PRED = 16       # lane holding output_pred  (model-1 masked argmax)
LANE_SEQ = 17        # lane holding predicted_seq (label-mask blend)

# ----------------------- packed weight slab layout ---------------------------
# All row offsets are multiples of 8 (sublane aligned); widest segment = 6*D.
OFF_HEAD_W = 0       # (W, D + C) = (32, 42)   [word2hidden_W | arch_W]
OFF_LAB_W = 32       # (C, D)     = (10, 32)   label_emb @ label2hidden_W
OFF_QKV_W = 48       # (2D, 6D)   = (64, 192)  block_diag(Wqkv_word, Wqkv_label)
OFF_WO_W = 112       # (2D, 2D)   = (64, 64)   block_diag(Wo_word,   Wo_label)
OFF_FF1_W = 176      # (2D, 2F)   = (64, 128)  block_diag(W1_word,   W1_label)
OFF_FF2_W = 240      # (2F, 2D)   = (128, 64)  block_diag(W2_word,   W2_label)
OFF_TAG_W = 368      # (2D, C)    = (64, 10)   t_hidden2tag weight
OFF_BIAS = 432       # 8 bias rows:
#   +0: [word2hidden_b | arch_b]          (1, D + C)
#   +1: label2hidden_b                    (1, D)
#   +2: [ffn_b1_word | ffn_b1_label]      (1, 2F)
#   +3: [ffn_b2_word | ffn_b2_label]      (1, 2D)
#   +4: t_hidden2tag bias                 (1, C)
SLAB_ROWS = 440
SLAB_COLS = 6 * D    # 192


# ================================ fused kernel ===============================
def _dual_layer_norm(h):
    """Per-stream LayerNorm on the column-block layout [word(0:D) | label(D:2D)].

    Variance via E[x^2]-E[x]^2 (one pass of moments per stream)."""
    def ln(xh):
        mu = jnp.mean(xh, axis=-1, keepdims=True)
        ms = jnp.mean(xh * xh, axis=-1, keepdims=True)
        var = ms - mu * mu
        return (xh - mu) * lax.rsqrt(var + 1e-5)
    return jnp.concatenate([ln(h[:, 0:D]), ln(h[:, D:2 * D])], axis=1)


def _fused_forward_kernel(aux_ref, w_ref, out_ref):
    """Whole PosteriorN forward in one kernel invocation (single grid step)."""
    dot = lambda a, b: jnp.dot(a, b, preferred_element_type=jnp.float32)

    # ---- runtime inputs carved out of the aux slab (static slices) ----------
    wr = aux_ref[0:R, 0:W]                         # (R, W)  word_represent
    m = aux_ref[0:R, W:W + 1]                      # (R, 1)  token mask (1./0.)
    attn_bias = aux_ref[R:R + R2, 0:R2]            # (2R,2R) additive attn mask

    # ---- weights carved out of the packed slab (static slices) --------------
    w_head = w_ref[OFF_HEAD_W:OFF_HEAD_W + W, 0:D + C]
    b_head = w_ref[OFF_BIAS + 0:OFF_BIAS + 1, 0:D + C]
    w_lab = w_ref[OFF_LAB_W:OFF_LAB_W + C, 0:D]
    b_lab = w_ref[OFF_BIAS + 1:OFF_BIAS + 2, 0:D]
    w_qkv = w_ref[OFF_QKV_W:OFF_QKV_W + 2 * D, 0:6 * D]
    w_o = w_ref[OFF_WO_W:OFF_WO_W + 2 * D, 0:2 * D]
    w_ff1 = w_ref[OFF_FF1_W:OFF_FF1_W + 2 * D, 0:2 * F]
    b_ff1 = w_ref[OFF_BIAS + 2:OFF_BIAS + 3, 0:2 * F]
    w_ff2 = w_ref[OFF_FF2_W:OFF_FF2_W + 2 * F, 0:2 * D]
    b_ff2 = w_ref[OFF_BIAS + 3:OFF_BIAS + 4, 0:2 * D]
    w_tag = w_ref[OFF_TAG_W:OFF_TAG_W + 2 * D, 0:C]
    b_tag = w_ref[OFF_BIAS + 4:OFF_BIAS + 5, 0:C]

    # ---- architectures logits + word2hidden in ONE GEMM ----------------------
    # TODO(synk): LSTM_NER is external; stand-in linear word_rep -> logits.
    hw = dot(wr, w_head) + b_head                  # (R, D+C): [word_hidden|logits]
    word_hidden = hw[:, 0:D]
    logits = hw[:, D:D + C]

    # ---- posterior head -------------------------------------------------------
    # soft_output_pred = softmax(logits); alpha1 = exp(logits) only feeds the
    # external confidence()/UCE loss, so it is not materialized.
    mx = jnp.max(logits, axis=-1, keepdims=True)
    e = jnp.exp(logits - mx)
    p = e * pl.reciprocal(jnp.sum(e, axis=-1, keepdims=True), approx=False)

    # masked argmax (predict())
    pmax = jnp.max(p, axis=-1, keepdims=True)
    cidx = lax.broadcasted_iota(jnp.int32, (R, C), 1)
    idx1 = jnp.min(jnp.where(p >= pmax, cidx, C), axis=-1, keepdims=True)
    output_pred = jnp.where(m == 0.0, 0, idx1)     # (R, 1) int32

    # TODO(synk): confidence()/generate_label_mask() are external; stand-in:
    # alea_score = max softmax prob, label_mask = (alea < threshold) & mask.
    label_mask = jnp.logical_and(pmax < THRESHOLD, m > 0.5)

    # ---- model-2 label branch -------------------------------------------------
    # ((p @ label_emb) * mask) @ W_l2h == (p * mask) @ (label_emb @ W_l2h),
    # since the mask is a per-row scalar; label_emb @ W_l2h is prefused in slab.
    label_hidden = dot(p * m, w_lab) + b_lab       # (R, D)

    # ---- encoder (TransformerEncoder stand-in), both streams fused ------------
    # TODO(synk): TransformerEncoder is external; standard masked self-attention
    # + FFN block, both streams processed via block-diagonal fused weights.
    x = jnp.concatenate([word_hidden, label_hidden], axis=1)       # (R, 2D)

    qkv = dot(x, w_qkv)                                            # (R, 6D)
    q = jnp.concatenate([qkv[:, 0:D], qkv[:, 3 * D:4 * D]], axis=0)        # (2R, D)
    k = jnp.concatenate([qkv[:, D:2 * D], qkv[:, 4 * D:5 * D]], axis=0)
    v = jnp.concatenate([qkv[:, 2 * D:3 * D], qkv[:, 5 * D:6 * D]], axis=0)

    s = lax.dot_general(q, k, (((1,), (1,)), ((), ())),
                        preferred_element_type=jnp.float32) * (float(D) ** -0.5)
    s = s + attn_bias            # NEG_INF on cross-stream/cross-batch/padded keys
    smax = jnp.max(s, axis=-1, keepdims=True)
    se = jnp.exp(s - smax)
    a = se * pl.reciprocal(jnp.sum(se, axis=-1, keepdims=True), approx=True)
    ctx = dot(a, v)                                                # (2R, D)
    ctx = jnp.concatenate([ctx[0:R, :], ctx[R:R2, :]], axis=1)     # (R, 2D)

    h = x + dot(ctx, w_o)                                          # (R, 2D)
    hn = _dual_layer_norm(h)
    ff = jnp.maximum(dot(hn, w_ff1) + b_ff1, 0.0)
    out2d = _dual_layer_norm(hn + dot(ff, w_ff2) + b_ff2)          # (R,2D)=[hh|hl]

    # ---- t_hidden2tag (single GEMM on the column-block [hh | hl]) -------------
    # model2_fc_dropout is identity at inference time.
    outs2 = dot(out2d, w_tag) + b_tag                              # (R, C)
    omax = jnp.max(outs2, axis=-1, keepdims=True)
    idx2 = jnp.min(jnp.where(outs2 >= omax, cidx, C), axis=-1, keepdims=True)
    model2_preds = jnp.where(m == 0.0, 0, idx2)                    # (R, 1)

    # predicted_seq = output_pred.masked_fill(label_mask==1,0)
    #               + model2_preds.masked_fill(label_mask==0,0)
    predicted_seq = jnp.where(label_mask, model2_preds, output_pred)

    # ---- single lane-dense (R, 128) f32 output slab ----------------------------
    out_ref[...] = jnp.zeros((R, OUT_LANES), jnp.float32)
    out_ref[:, 0:C] = p
    out_ref[:, LANE_PRED:LANE_PRED + 1] = output_pred.astype(jnp.float32)
    out_ref[:, LANE_SEQ:LANE_SEQ + 1] = predicted_seq.astype(jnp.float32)


def fused_forward_pallas(aux, slab):
    """Single pallas_call, single grid step, 2 input DMAs, 1 output DMA."""
    return pl.pallas_call(
        _fused_forward_kernel,
        out_shape=jax.ShapeDtypeStruct((R, OUT_LANES), jnp.float32),
        grid=(1,),
        in_specs=[
            pl.BlockSpec((AUX_ROWS, AUX_COLS), lambda i: (0, 0)),
            pl.BlockSpec((SLAB_ROWS, SLAB_COLS), lambda i: (0, 0)),
        ],
        out_specs=pl.BlockSpec((R, OUT_LANES), lambda i: (0, 0)),
        compiler_params=pltpu.CompilerParams(
            dimension_semantics=("arbitrary",)),   # one step, one TensorCore
    )(aux, slab)


# ============================ parameter setup ================================
def _block_diag(a, b):
    ra, ca = a.shape
    rb, cb = b.shape
    top = jnp.concatenate([a, jnp.zeros((ra, cb), jnp.float32)], axis=1)
    bot = jnp.concatenate([jnp.zeros((rb, ca), jnp.float32), b], axis=1)
    return jnp.concatenate([top, bot], axis=0)


def pack_weight_slab(raw):
    """Pack all forward-pass weights into one (SLAB_ROWS, SLAB_COLS) f32 slab."""
    slab = jnp.zeros((SLAB_ROWS, SLAB_COLS), jnp.float32)

    def put(s, row, arr):
        arr = jnp.asarray(arr, jnp.float32)
        return s.at[row:row + arr.shape[0], 0:arr.shape[1]].set(arr)

    w_head = jnp.concatenate([raw["w2h_w"], raw["arch_w"]], axis=1)     # (W, D+C)
    b_head = jnp.concatenate([raw["w2h_b"], raw["arch_b"]], axis=1)     # (1, D+C)
    w_lab = raw["label_emb"] @ raw["l2h_w"]                             # (C, D)

    slab = put(slab, OFF_HEAD_W, w_head)
    slab = put(slab, OFF_LAB_W, w_lab)
    slab = put(slab, OFF_QKV_W, _block_diag(raw["enc_wqkv"][0], raw["enc_wqkv"][1]))
    slab = put(slab, OFF_WO_W, _block_diag(raw["enc_wo"][0], raw["enc_wo"][1]))
    slab = put(slab, OFF_FF1_W, _block_diag(raw["enc_w1"][0], raw["enc_w1"][1]))
    slab = put(slab, OFF_FF2_W, _block_diag(raw["enc_w2"][0], raw["enc_w2"][1]))
    slab = put(slab, OFF_TAG_W, raw["tag_w"])
    slab = put(slab, OFF_BIAS + 0, b_head)
    slab = put(slab, OFF_BIAS + 1, raw["l2h_b"])
    slab = put(slab, OFF_BIAS + 2,
               jnp.concatenate([raw["enc_b1"][0], raw["enc_b1"][1]], axis=1))
    slab = put(slab, OFF_BIAS + 3,
               jnp.concatenate([raw["enc_b2"][0], raw["enc_b2"][1]], axis=1))
    slab = put(slab, OFF_BIAS + 4, raw["tag_b"])
    return slab


def init_params(key):
    ks = jax.random.split(key, 10)
    n = lambda k, shape, s=0.1: jax.random.normal(k, shape, jnp.float32) * s
    raw = {
        # TODO(synk): WordRep is external; stand-in word embedding table.
        "word_emb": n(ks[0], (VOCAB, W), 1.0),
        # TODO(synk): LSTM_NER ("architectures") is external; stand-in linear.
        "arch_w": n(ks[1], (W, C)), "arch_b": jnp.zeros((1, C), jnp.float32),
        # label_embedding (random_embedding_label stand-in)
        "label_emb": n(ks[2], (C, E), 1.0),
        # word2hidden / label2hidden
        "w2h_w": n(ks[3], (W, D)), "w2h_b": jnp.zeros((1, D), jnp.float32),
        "l2h_w": n(ks[4], (E, D)), "l2h_b": jnp.zeros((1, D), jnp.float32),
        # encoder weights, streams stacked along leading dim: [0]=word, [1]=label
        "enc_wqkv": n(ks[5], (2, D, 3 * D)),
        "enc_wo":   n(ks[6], (2, D, D)),
        "enc_w1":   n(ks[7], (2, D, F)),
        "enc_b1":   jnp.zeros((2, 1, F), jnp.float32),
        "enc_w2":   n(ks[8], (2, F, D)),
        "enc_b2":   jnp.zeros((2, 1, D), jnp.float32),
        # t_hidden2tag: Linear(2D -> C) on cat([hh, hl], -1)
        "tag_w": n(ks[9], (2 * D, C)),
        "tag_b": jnp.zeros((1, C), jnp.float32),
    }
    return {"word_emb": raw["word_emb"], "slab": pack_weight_slab(raw)}


# ================================ forward ====================================
@jax.jit
def posterior_n_forward(params, batch_word, batch_label, mask):
    """Returns (output_pred, soft_output_pred, predicted_seq)."""
    del batch_label  # only used by external confidence()/losses (not returned)
    mflat = mask.reshape(R).astype(jnp.float32)

    # TODO(synk): WordRep is external; stand-in embedding lookup (XLA gather).
    wr = jnp.take(params["word_emb"], batch_word, axis=0).reshape(R, W)

    # aux rows 0:R -> [word_represent | token mask | zero pad]
    top = jnp.concatenate(
        [wr, mflat[:, None], jnp.zeros((R, AUX_COLS - W - 1), jnp.float32)],
        axis=1)

    # aux rows R:R+2R -> additive attention mask for the row-stacked
    # (stream, batch) groups of S tokens: allow same-group, non-padded keys.
    km = jnp.concatenate([mflat, mflat])                    # key mask, (2R,)
    gid = jnp.arange(R2, dtype=jnp.int32) // S              # group id per row
    allow = (gid[:, None] == gid[None, :]) & (km[None, :] > 0.5)
    attn_bias = jnp.where(allow, 0.0, NEG_INF).astype(jnp.float32)
    bot = jnp.concatenate(
        [attn_bias, jnp.zeros((R2, AUX_COLS - R2), jnp.float32)], axis=1)

    aux = jnp.concatenate([top, bot], axis=0)               # (48, 64)

    out = fused_forward_pallas(aux, params["slab"])         # (R, 128)

    soft_output_pred = out[:, 0:C].reshape(B, S, C)
    output_pred = out[:, LANE_PRED].astype(jnp.int32).reshape(B, S)
    predicted_seq = out[:, LANE_SEQ].astype(jnp.int32).reshape(B, S)
    return output_pred, soft_output_pred, predicted_seq


# ================================== main =====================================
if __name__ == "__main__":
    key = jax.random.PRNGKey(0)
    kp, kw, kl = jax.random.split(key, 3)

    params = init_params(kp)
    batch_word = jax.random.randint(kw, (B, S), 1, VOCAB, dtype=jnp.int32)
    batch_label = jax.random.randint(kl, (B, S), 1, C, dtype=jnp.int32)
    # mask: last two positions of batch item 1 are padding
    mask = jnp.ones((B, S), jnp.int32).at[1, -2:].set(0)

    output_pred, soft_pred, predicted_seq = posterior_n_forward(
        params, batch_word, batch_label, mask
    )
    jax.block_until_ready((output_pred, soft_pred, predicted_seq))

    assert output_pred.shape == (B, S) and output_pred.dtype == jnp.int32
    assert soft_pred.shape == (B, S, C) and soft_pred.dtype == jnp.float32
    assert predicted_seq.shape == (B, S) and predicted_seq.dtype == jnp.int32
    # padded positions must predict label 0
    assert int(output_pred[1, -1]) == 0 and int(predicted_seq[1, -1]) == 0
    # softmax rows (valid tokens) sum to ~1
    assert abs(float(soft_pred[0, 0].sum()) - 1.0) < 1e-3
    print("KERNEL_OK")
</pallas_src>

<mosaic_0001>
module attributes {stable_mosaic.version = 11 : i64} {
  func.func @_fused_forward_kernel(%arg0: i32, %arg1: memref<48x64xf32, #tpu.memory_space<vmem>>, %arg2: memref<440x192xf32, #tpu.memory_space<vmem>>, %arg3: memref<16x128xf32, #tpu.memory_space<vmem>>) attributes {dimension_semantics = [#tpu.dimension_semantics<arbitrary>], iteration_bounds = array<i64: 1>, scalar_prefetch = 0 : i64, scratch_operands = 0 : i64, tpu.core_type = #tpu.core_type<tc>, window_params = [{pipeline_mode = #tpu.pipeline_mode<synchronous>, transform_indices = @transform_0, window_bounds = array<i64: 48, 64>}, {pipeline_mode = #tpu.pipeline_mode<synchronous>, transform_indices = @transform_1, window_bounds = array<i64: 440, 192>}, {pipeline_mode = #tpu.pipeline_mode<synchronous>, transform_indices = @transform_2, window_bounds = array<i64: 16, 128>}]} {
    %c0 = arith.constant 0 : index
    %c0_0 = arith.constant 0 : index
    %0 = vector.load %arg1[%c0, %c0_0] : memref<48x64xf32, #tpu.memory_space<vmem>>, vector<16x32xf32>
    %c0_1 = arith.constant 0 : index
    %c32 = arith.constant 32 : index
    %1 = vector.load %arg1[%c0_1, %c32] : memref<48x64xf32, #tpu.memory_space<vmem>>, vector<16x1xf32>
    %c16 = arith.constant 16 : index
    %c0_2 = arith.constant 0 : index
    %2 = vector.load %arg1[%c16, %c0_2] : memref<48x64xf32, #tpu.memory_space<vmem>>, vector<32x32xf32>
    %c0_3 = arith.constant 0 : index
    %c0_4 = arith.constant 0 : index
    %3 = vector.load %arg2[%c0_3, %c0_4] : memref<440x192xf32, #tpu.memory_space<vmem>>, vector<32x42xf32>
    %c432 = arith.constant 432 : index
    %c0_5 = arith.constant 0 : index
    %4 = vector.load %arg2[%c432, %c0_5] : memref<440x192xf32, #tpu.memory_space<vmem>>, vector<1x42xf32>
    %c32_6 = arith.constant 32 : index
    %c0_7 = arith.constant 0 : index
    %5 = vector.load %arg2[%c32_6, %c0_7] : memref<440x192xf32, #tpu.memory_space<vmem>>, vector<10x32xf32>
    %c433 = arith.constant 433 : index
    %c0_8 = arith.constant 0 : index
    %6 = vector.load %arg2[%c433, %c0_8] : memref<440x192xf32, #tpu.memory_space<vmem>>, vector<1x32xf32>
    %c48 = arith.constant 48 : index
    %c0_9 = arith.constant 0 : index
    %7 = vector.load %arg2[%c48, %c0_9] : memref<440x192xf32, #tpu.memory_space<vmem>>, vector<64x192xf32>
    %c112 = arith.constant 112 : index
    %c0_10 = arith.constant 0 : index
    %8 = vector.load %arg2[%c112, %c0_10] : memref<440x192xf32, #tpu.memory_space<vmem>>, vector<64x64xf32>
    %c176 = arith.constant 176 : index
    %c0_11 = arith.constant 0 : index
    %9 = vector.load %arg2[%c176, %c0_11] : memref<440x192xf32, #tpu.memory_space<vmem>>, vector<64x128xf32>
    %c434 = arith.constant 434 : index
    %c0_12 = arith.constant 0 : index
    %10 = vector.load %arg2[%c434, %c0_12] : memref<440x192xf32, #tpu.memory_space<vmem>>, vector<1x128xf32>
    %c240 = arith.constant 240 : index
    %c0_13 = arith.constant 0 : index
    %11 = vector.load %arg2[%c240, %c0_13] : memref<440x192xf32, #tpu.memory_space<vmem>>, vector<128x64xf32>
    %c435 = arith.constant 435 : index
    %c0_14 = arith.constant 0 : index
    %12 = vector.load %arg2[%c435, %c0_14] : memref<440x192xf32, #tpu.memory_space<vmem>>, vector<1x64xf32>
    %c368 = arith.constant 368 : index
    %c0_15 = arith.constant 0 : index
    %13 = vector.load %arg2[%c368, %c0_15] : memref<440x192xf32, #tpu.memory_space<vmem>>, vector<64x10xf32>
    %c436 = arith.constant 436 : index
    %c0_16 = arith.constant 0 : index
    %14 = vector.load %arg2[%c436, %c0_16] : memref<440x192xf32, #tpu.memory_space<vmem>>, vector<1x10xf32>
    %cst = arith.constant dense<0.000000e+00> : vector<16x42xf32>
    %15 = tpu.matmul %0, %3, %cst {dimension_numbers = #tpu.dot_dimension_numbers<[1], [0], [0], [1], [0, 0, 1, 1], [], []>} : vector<16x32xf32>, vector<32x42xf32>, vector<16x42xf32> -> vector<16x42xf32>
    %16 = vector.broadcast %4 : vector<1x42xf32> to vector<16x42xf32>
    %17 = arith.addf %15, %16 : vector<16x42xf32>
    %18 = vector.extract_strided_slice %17 {offsets = [0, 0], sizes = [16, 32], strides = [1, 1]} : vector<16x42xf32> to vector<16x32xf32>
    %19 = vector.extract_strided_slice %17 {offsets = [0, 32], sizes = [16, 10], strides = [1, 1]} : vector<16x42xf32> to vector<16x10xf32>
    %cst_17 = arith.constant dense<0xFF800000> : vector<16xf32>
    %20 = vector.multi_reduction <maximumf>, %19, %cst_17 [1] : vector<16x10xf32> to vector<16xf32>
    %21 = vector.shape_cast %20 : vector<16xf32> to vector<16x1xf32>
    %22 = vector.broadcast %21 : vector<16x1xf32> to vector<16x10xf32>
    %23 = arith.subf %19, %22 : vector<16x10xf32>
    %24 = math.exp %23 : vector<16x10xf32>
    %cst_18 = arith.constant dense<0.000000e+00> : vector<16xf32>
    %25 = vector.multi_reduction <add>, %24, %cst_18 [1] : vector<16x10xf32> to vector<16xf32>
    %26 = vector.shape_cast %25 : vector<16xf32> to vector<16x1xf32>
    %27 = tpu.reciprocal %26 : vector<16x1xf32> -> vector<16x1xf32>
    %28 = vector.broadcast %27 : vector<16x1xf32> to vector<16x10xf32>
    %29 = arith.mulf %24, %28 : vector<16x10xf32>
    %cst_19 = arith.constant dense<0xFF800000> : vector<16xf32>
    %30 = vector.multi_reduction <maximumf>, %29, %cst_19 [1] : vector<16x10xf32> to vector<16xf32>
    %31 = vector.shape_cast %30 : vector<16xf32> to vector<16x1xf32>
    %32 = tpu.iota {dimensions = array<i32: 1>} : vector<16x10xi32>
    %33 = vector.broadcast %31 : vector<16x1xf32> to vector<16x10xf32>
    %34 = arith.cmpf oge, %29, %33 : vector<16x10xf32>
    %c10_i32 = arith.constant 10 : i32
    %35 = vector.broadcast %c10_i32 : i32 to vector<16x10xi32>
    %36 = arith.select %34, %32, %35 : vector<16x10xi1>, vector<16x10xi32>
    %cst_20 = arith.constant dense<2147483647> : vector<16xi32>
    %37 = vector.multi_reduction <minsi>, %36, %cst_20 [1] : vector<16x10xi32> to vector<16xi32>
    %38 = vector.shape_cast %37 : vector<16xi32> to vector<16x1xi32>
    %cst_21 = arith.constant 0.000000e+00 : f32
    %39 = vector.broadcast %cst_21 : f32 to vector<16x1xf32>
    %40 = arith.cmpf oeq, %1, %39 : vector<16x1xf32>
    %c0_i32 = arith.constant 0 : i32
    %41 = vector.broadcast %c0_i32 : i32 to vector<16x1xi32>
    %42 = arith.select %40, %41, %38 : vector<16x1xi1>, vector<16x1xi32>
    %cst_22 = arith.constant 0.699999988 : f32
    %43 = vector.broadcast %cst_22 : f32 to vector<16x1xf32>
    %44 = arith.cmpf olt, %31, %43 : vector<16x1xf32>
    %cst_23 = arith.constant 5.000000e-01 : f32
    %45 = vector.broadcast %cst_23 : f32 to vector<16x1xf32>
    %46 = arith.cmpf ogt, %1, %45 : vector<16x1xf32>
    %47 = arith.andi %44, %46 : vector<16x1xi1>
    %48 = vector.broadcast %1 : vector<16x1xf32> to vector<16x10xf32>
    %49 = arith.mulf %29, %48 : vector<16x10xf32>
    %cst_24 = arith.constant dense<0.000000e+00> : vector<16x32xf32>
    %50 = tpu.matmul %49, %5, %cst_24 {dimension_numbers = #tpu.dot_dimension_numbers<[1], [0], [0], [1], [0, 0, 1, 1], [], []>} : vector<16x10xf32>, vector<10x32xf32>, vector<16x32xf32> -> vector<16x32xf32>
    %51 = vector.broadcast %6 : vector<1x32xf32> to vector<16x32xf32>
    %52 = arith.addf %50, %51 : vector<16x32xf32>
    %53 = tpu.concatenate %18, %52 in 1 : vector<16x32xf32>, vector<16x32xf32> -> vector<16x64xf32>
    %cst_25 = arith.constant dense<0.000000e+00> : vector<16x192xf32>
    %54 = tpu.matmul %53, %7, %cst_25 {dimension_numbers = #tpu.dot_dimension_numbers<[1], [0], [0], [1], [0, 0, 1, 1], [], []>} : vector<16x64xf32>, vector<64x192xf32>, vector<16x192xf32> -> vector<16x192xf32>
    %55 = vector.extract_strided_slice %54 {offsets = [0, 0], sizes = [16, 32], strides = [1, 1]} : vector<16x192xf32> to vector<16x32xf32>
    %56 = vector.extract_strided_slice %54 {offsets = [0, 96], sizes = [16, 32], strides = [1, 1]} : vector<16x192xf32> to vector<16x32xf32>
    %57 = tpu.concatenate %55, %56 in 0 : vector<16x32xf32>, vector<16x32xf32> -> vector<32x32xf32>
    %58 = vector.extract_strided_slice %54 {offsets = [0, 32], sizes = [16, 32], strides = [1, 1]} : vector<16x192xf32> to vector<16x32xf32>
    %59 = vector.extract_strided_slice %54 {offsets = [0, 128], sizes = [16, 32], strides = [1, 1]} : vector<16x192xf32> to vector<16x32xf32>
    %60 = tpu.concatenate %58, %59 in 0 : vector<16x32xf32>, vector<16x32xf32> -> vector<32x32xf32>
    %61 = vector.extract_strided_slice %54 {offsets = [0, 64], sizes = [16, 32], strides = [1, 1]} : vector<16x192xf32> to vector<16x32xf32>
    %62 = vector.extract_strided_slice %54 {offsets = [0, 160], sizes = [16, 32], strides = [1, 1]} : vector<16x192xf32> to vector<16x32xf32>
    %63 = tpu.concatenate %61, %62 in 0 : vector<16x32xf32>, vector<16x32xf32> -> vector<32x32xf32>
    %cst_26 = arith.constant dense<0.000000e+00> : vector<32x32xf32>
    %64 = tpu.matmul %57, %60, %cst_26 {dimension_numbers = #tpu.dot_dimension_numbers<[1], [1], [0], [0], [0, 0, 1, 0], [], []>} : vector<32x32xf32>, vector<32x32xf32>, vector<32x32xf32> -> vector<32x32xf32>
    %cst_27 = arith.constant 0.176776692 : f32
    %65 = vector.broadcast %cst_27 : f32 to vector<32x32xf32>
    %66 = arith.mulf %64, %65 : vector<32x32xf32>
    %67 = arith.addf %66, %2 : vector<32x32xf32>
    %cst_28 = arith.constant dense<0xFF800000> : vector<32xf32>
    %68 = vector.multi_reduction <maximumf>, %67, %cst_28 [1] : vector<32x32xf32> to vector<32xf32>
    %69 = vector.shape_cast %68 : vector<32xf32> to vector<32x1xf32>
    %70 = vector.broadcast %69 : vector<32x1xf32> to vector<32x32xf32>
    %71 = arith.subf %67, %70 : vector<32x32xf32>
    %72 = math.exp %71 : vector<32x32xf32>
    %cst_29 = arith.constant dense<0.000000e+00> : vector<32xf32>
    %73 = vector.multi_reduction <add>, %72, %cst_29 [1] : vector<32x32xf32> to vector<32xf32>
    %74 = vector.shape_cast %73 : vector<32xf32> to vector<32x1xf32>
    %75 = tpu.reciprocal %74 {approx = true} : vector<32x1xf32> -> vector<32x1xf32>
    %76 = vector.broadcast %75 : vector<32x1xf32> to vector<32x32xf32>
    %77 = arith.mulf %72, %76 : vector<32x32xf32>
    %cst_30 = arith.constant dense<0.000000e+00> : vector<32x32xf32>
    %78 = tpu.matmul %77, %63, %cst_30 {dimension_numbers = #tpu.dot_dimension_numbers<[1], [0], [0], [1], [0, 0, 1, 1], [], []>} : vector<32x32xf32>, vector<32x32xf32>, vector<32x32xf32> -> vector<32x32xf32>
    %79 = vector.extract_strided_slice %78 {offsets = [0, 0], sizes = [16, 32], strides = [1, 1]} : vector<32x32xf32> to vector<16x32xf32>
    %80 = vector.extract_strided_slice %78 {offsets = [16, 0], sizes = [16, 32], strides = [1, 1]} : vector<32x32xf32> to vector<16x32xf32>
    %81 = tpu.concatenate %79, %80 in 1 : vector<16x32xf32>, vector<16x32xf32> -> vector<16x64xf32>
    %cst_31 = arith.constant dense<0.000000e+00> : vector<16x64xf32>
    %82 = tpu.matmul %81, %8, %cst_31 {dimension_numbers = #tpu.dot_dimension_numbers<[1], [0], [0], [1], [0, 0, 1, 1], [], []>} : vector<16x64xf32>, vector<64x64xf32>, vector<16x64xf32> -> vector<16x64xf32>
    %83 = arith.addf %53, %82 : vector<16x64xf32>
    %84 = vector.extract_strided_slice %83 {offsets = [0, 0], sizes = [16, 32], strides = [1, 1]} : vector<16x64xf32> to vector<16x32xf32>
    %cst_32 = arith.constant dense<0.000000e+00> : vector<16xf32>
    %85 = vector.multi_reduction <add>, %84, %cst_32 [1] : vector<16x32xf32> to vector<16xf32>
    %86 = vector.shape_cast %85 : vector<16xf32> to vector<16x1xf32>
    %cst_33 = arith.constant 3.200000e+01 : f32
    %87 = vector.broadcast %cst_33 : f32 to vector<16x1xf32>
    %88 = arith.divf %86, %87 : vector<16x1xf32>
    %89 = arith.mulf %84, %84 : vector<16x32xf32>
    %cst_34 = arith.constant dense<0.000000e+00> : vector<16xf32>
    %90 = vector.multi_reduction <add>, %89, %cst_34 [1] : vector<16x32xf32> to vector<16xf32>
    %91 = vector.shape_cast %90 : vector<16xf32> to vector<16x1xf32>
    %cst_35 = arith.constant 3.200000e+01 : f32
    %92 = vector.broadcast %cst_35 : f32 to vector<16x1xf32>
    %93 = arith.divf %91, %92 : vector<16x1xf32>
    %94 = arith.mulf %88, %88 : vector<16x1xf32>
    %95 = arith.subf %93, %94 : vector<16x1xf32>
    %96 = vector.broadcast %88 : vector<16x1xf32> to vector<16x32xf32>
    %97 = arith.subf %84, %96 : vector<16x32xf32>
    %cst_36 = arith.constant 9.99999974E-6 : f32
    %98 = vector.broadcast %cst_36 : f32 to vector<16x1xf32>
    %99 = arith.addf %95, %98 : vector<16x1xf32>
    %100 = math.rsqrt %99 : vector<16x1xf32>
    %101 = vector.broadcast %100 : vector<16x1xf32> to vector<16x32xf32>
    %102 = arith.mulf %97, %101 : vector<16x32xf32>
    %103 = vector.extract_strided_slice %83 {offsets = [0, 32], sizes = [16, 32], strides = [1, 1]} : vector<16x64xf32> to vector<16x32xf32>
    %cst_37 = arith.constant dense<0.000000e+00> : vector<16xf32>
    %104 = vector.multi_reduction <add>, %103, %cst_37 [1] : vector<16x32xf32> to vector<16xf32>
    %105 = vector.shape_cast %104 : vector<16xf32> to vector<16x1xf32>
    %cst_38 = arith.constant 3.200000e+01 : f32
    %106 = vector.broadcast %cst_38 : f32 to vector<16x1xf32>
    %107 = arith.divf %105, %106 : vector<16x1xf32>
    %108 = arith.mulf %103, %103 : vector<16x32xf32>
    %cst_39 = arith.constant dense<0.000000e+00> : vector<16xf32>
    %109 = vector.multi_reduction <add>, %108, %cst_39 [1] : vector<16x32xf32> to vector<16xf32>
    %110 = vector.shape_cast %109 : vector<16xf32> to vector<16x1xf32>
    %cst_40 = arith.constant 3.200000e+01 : f32
    %111 = vector.broadcast %cst_40 : f32 to vector<16x1xf32>
    %112 = arith.divf %110, %111 : vector<16x1xf32>
    %113 = arith.mulf %107, %107 : vector<16x1xf32>
    %114 = arith.subf %112, %113 : vector<16x1xf32>
    %115 = vector.broadcast %107 : vector<16x1xf32> to vector<16x32xf32>
    %116 = arith.subf %103, %115 : vector<16x32xf32>
    %cst_41 = arith.constant 9.99999974E-6 : f32
    %117 = vector.broadcast %cst_41 : f32 to vector<16x1xf32>
    %118 = arith.addf %114, %117 : vector<16x1xf32>
    %119 = math.rsqrt %118 : vector<16x1xf32>
    %120 = vector.broadcast %119 : vector<16x1xf32> to vector<16x32xf32>
    %121 = arith.mulf %116, %120 : vector<16x32xf32>
    %122 = tpu.concatenate %102, %121 in 1 : vector<16x32xf32>, vector<16x32xf32> -> vector<16x64xf32>
    %cst_42 = arith.constant dense<0.000000e+00> : vector<16x128xf32>
    %123 = tpu.matmul %122, %9, %cst_42 {dimension_numbers = #tpu.dot_dimension_numbers<[1], [0], [0], [1], [0, 0, 1, 1], [], []>} : vector<16x64xf32>, vector<64x128xf32>, vector<16x128xf32> -> vector<16x128xf32>
    %124 = vector.broadcast %10 : vector<1x128xf32> to vector<16x128xf32>
    %125 = arith.addf %123, %124 : vector<16x128xf32>
    %cst_43 = arith.constant 0.000000e+00 : f32
    %126 = vector.broadcast %cst_43 : f32 to vector<16x128xf32>
    %127 = arith.maximumf %125, %126 : vector<16x128xf32>
    %cst_44 = arith.constant dense<0.000000e+00> : vector<16x64xf32>
    %128 = tpu.matmul %127, %11, %cst_44 {dimension_numbers = #tpu.dot_dimension_numbers<[1], [0], [0], [1], [0, 0, 1, 1], [], []>} : vector<16x128xf32>, vector<128x64xf32>, vector<16x64xf32> -> vector<16x64xf32>
    %129 = arith.addf %122, %128 : vector<16x64xf32>
    %130 = vector.broadcast %12 : vector<1x64xf32> to vector<16x64xf32>
    %131 = arith.addf %129, %130 : vector<16x64xf32>
    %132 = vector.extract_strided_slice %131 {offsets = [0, 0], sizes = [16, 32], strides = [1, 1]} : vector<16x64xf32> to vector<16x32xf32>
    %cst_45 = arith.constant dense<0.000000e+00> : vector<16xf32>
    %133 = vector.multi_reduction <add>, %132, %cst_45 [1] : vector<16x32xf32> to vector<16xf32>
    %134 = vector.shape_cast %133 : vector<16xf32> to vector<16x1xf32>
    %cst_46 = arith.constant 3.200000e+01 : f32
    %135 = vector.broadcast %cst_46 : f32 to vector<16x1xf32>
    %136 = arith.divf %134, %135 : vector<16x1xf32>
    %137 = arith.mulf %132, %132 : vector<16x32xf32>
    %cst_47 = arith.constant dense<0.000000e+00> : vector<16xf32>
    %138 = vector.multi_reduction <add>, %137, %cst_47 [1] : vector<16x32xf32> to vector<16xf32>
    %139 = vector.shape_cast %138 : vector<16xf32> to vector<16x1xf32>
    %cst_48 = arith.constant 3.200000e+01 : f32
    %140 = vector.broadcast %cst_48 : f32 to vector<16x1xf32>
    %141 = arith.divf %139, %140 : vector<16x1xf32>
    %142 = arith.mulf %136, %136 : vector<16x1xf32>
    %143 = arith.subf %141, %142 : vector<16x1xf32>
    %144 = vector.broadcast %136 : vector<16x1xf32> to vector<16x32xf32>
    %145 = arith.subf %132, %144 : vector<16x32xf32>
    %cst_49 = arith.constant 9.99999974E-6 : f32
    %146 = vector.broadcast %cst_49 : f32 to vector<16x1xf32>
    %147 = arith.addf %143, %146 : vector<16x1xf32>
    %148 = math.rsqrt %147 : vector<16x1xf32>
    %149 = vector.broadcast %148 : vector<16x1xf32> to vector<16x32xf32>
    %150 = arith.mulf %145, %149 : vector<16x32xf32>
    %151 = vector.extract_strided_slice %131 {offsets = [0, 32], sizes = [16, 32], strides = [1, 1]} : vector<16x64xf32> to vector<16x32xf32>
    %cst_50 = arith.constant dense<0.000000e+00> : vector<16xf32>
    %152 = vector.multi_reduction <add>, %151, %cst_50 [1] : vector<16x32xf32> to vector<16xf32>
    %153 = vector.shape_cast %152 : vector<16xf32> to vector<16x1xf32>
    %cst_51 = arith.constant 3.200000e+01 : f32
    %154 = vector.broadcast %cst_51 : f32 to vector<16x1xf32>
    %155 = arith.divf %153, %154 : vector<16x1xf32>
    %156 = arith.mulf %151, %151 : vector<16x32xf32>
    %cst_52 = arith.constant dense<0.000000e+00> : vector<16xf32>
    %157 = vector.multi_reduction <add>, %156, %cst_52 [1] : vector<16x32xf32> to vector<16xf32>
    %158 = vector.shape_cast %157 : vector<16xf32> to vector<16x1xf32>
    %cst_53 = arith.constant 3.200000e+01 : f32
    %159 = vector.broadcast %cst_53 : f32 to vector<16x1xf32>
    %160 = arith.divf %158, %159 : vector<16x1xf32>
    %161 = arith.mulf %155, %155 : vector<16x1xf32>
    %162 = arith.subf %160, %161 : vector<16x1xf32>
    %163 = vector.broadcast %155 : vector<16x1xf32> to vector<16x32xf32>
    %164 = arith.subf %151, %163 : vector<16x32xf32>
    %cst_54 = arith.constant 9.99999974E-6 : f32
    %165 = vector.broadcast %cst_54 : f32 to vector<16x1xf32>
    %166 = arith.addf %162, %165 : vector<16x1xf32>
    %167 = math.rsqrt %166 : vector<16x1xf32>
    %168 = vector.broadcast %167 : vector<16x1xf32> to vector<16x32xf32>
    %169 = arith.mulf %164, %168 : vector<16x32xf32>
    %170 = tpu.concatenate %150, %169 in 1 : vector<16x32xf32>, vector<16x32xf32> -> vector<16x64xf32>
    %cst_55 = arith.constant dense<0.000000e+00> : vector<16x10xf32>
    %171 = tpu.matmul %170, %13, %cst_55 {dimension_numbers = #tpu.dot_dimension_numbers<[1], [0], [0], [1], [0, 0, 1, 1], [], []>} : vector<16x64xf32>, vector<64x10xf32>, vector<16x10xf32> -> vector<16x10xf32>
    %172 = vector.broadcast %14 : vector<1x10xf32> to vector<16x10xf32>
    %173 = arith.addf %171, %172 : vector<16x10xf32>
    %cst_56 = arith.constant dense<0xFF800000> : vector<16xf32>
    %174 = vector.multi_reduction <maximumf>, %173, %cst_56 [1] : vector<16x10xf32> to vector<16xf32>
    %175 = vector.shape_cast %174 : vector<16xf32> to vector<16x1xf32>
    %176 = vector.broadcast %175 : vector<16x1xf32> to vector<16x10xf32>
    %177 = arith.cmpf oge, %173, %176 : vector<16x10xf32>
    %c10_i32_57 = arith.constant 10 : i32
    %178 = vector.broadcast %c10_i32_57 : i32 to vector<16x10xi32>
    %179 = arith.select %177, %32, %178 : vector<16x10xi1>, vector<16x10xi32>
    %cst_58 = arith.constant dense<2147483647> : vector<16xi32>
    %180 = vector.multi_reduction <minsi>, %179, %cst_58 [1] : vector<16x10xi32> to vector<16xi32>
    %181 = vector.shape_cast %180 : vector<16xi32> to vector<16x1xi32>
    %cst_59 = arith.constant 0.000000e+00 : f32
    %182 = vector.broadcast %cst_59 : f32 to vector<16x1xf32>
    %183 = arith.cmpf oeq, %1, %182 : vector<16x1xf32>
    %c0_i32_60 = arith.constant 0 : i32
    %184 = vector.broadcast %c0_i32_60 : i32 to vector<16x1xi32>
    %185 = arith.select %183, %184, %181 : vector<16x1xi1>, vector<16x1xi32>
    %186 = arith.select %47, %185, %42 : vector<16x1xi1>, vector<16x1xi32>
    %cst_61 = arith.constant 0.000000e+00 : f32
    %187 = vector.broadcast %cst_61 : f32 to vector<16x128xf32>
    %c0_62 = arith.constant 0 : index
    %c0_63 = arith.constant 0 : index
    %188 = vector.load %arg3[%c0_62, %c0_63] : memref<16x128xf32, #tpu.memory_space<vmem>>, vector<16x128xf32>
    tpu.vector_store %arg3[%c0_62, %c0_63], %187 {strides = array<i32>} : memref<16x128xf32, #tpu.memory_space<vmem>>, vector<16x128xf32>,
    %c0_64 = arith.constant 0 : index
    %c0_65 = arith.constant 0 : index
    %189 = vector.load %arg3[%c0_64, %c0_65] : memref<16x128xf32, #tpu.memory_space<vmem>>, vector<16x10xf32>
    tpu.vector_store %arg3[%c0_64, %c0_65], %29 {strides = array<i32>} : memref<16x128xf32, #tpu.memory_space<vmem>>, vector<16x10xf32>,
    %190 = arith.sitofp %42 : vector<16x1xi32> to vector<16x1xf32>
    %c0_66 = arith.constant 0 : index
    %c16_67 = arith.constant 16 : index
    %191 = vector.load %arg3[%c0_66, %c16_67] : memref<16x128xf32, #tpu.memory_space<vmem>>, vector<16x1xf32>
    tpu.vector_store %arg3[%c0_66, %c16_67], %190 {strides = array<i32>} : memref<16x128xf32, #tpu.memory_space<vmem>>, vector<16x1xf32>,
    %192 = arith.sitofp %186 : vector<16x1xi32> to vector<16x1xf32>
    %c0_68 = arith.constant 0 : index
    %c17 = arith.constant 17 : index
    %193 = vector.load %arg3[%c0_68, %c17] : memref<16x128xf32, #tpu.memory_space<vmem>>, vector<16x1xf32>
    tpu.vector_store %arg3[%c0_68, %c17], %192 {strides = array<i32>} : memref<16x128xf32, #tpu.memory_space<vmem>>, vector<16x1xf32>,
    return
  }
  func.func @transform_0(%arg0: i32) -> (i32, i32) {
    %c0_i32 = arith.constant 0 : i32
    %c0_i32_0 = arith.constant 0 : i32
    %c0_i32_1 = arith.constant 0 : i32
    return %c0_i32, %c0_i32_0 : i32, i32
  }
  func.func @transform_1(%arg0: i32) -> (i32, i32) {
    %c0_i32 = arith.constant 0 : i32
    %c0_i32_0 = arith.constant 0 : i32
    %c0_i32_1 = arith.constant 0 : i32
    return %c0_i32, %c0_i32_0 : i32, i32
  }
  func.func @transform_2(%arg0: i32) -> (i32, i32) {
    %c0_i32 = arith.constant 0 : i32
    %c0_i32_0 = arith.constant 0 : i32
    %c0_i32_1 = arith.constant 0 : i32
    return %c0_i32, %c0_i32_0 : i32, i32
  }
}

</mosaic_0001>

<llo_original>
// kernel: posterior_n_forward.1
$region0: #{posterior_n_forward.1}
  #allocation0 [shape = 'u32[]', space=smem, size = 0x4, offset = 0x4, fixed_abs, tag = 'smem constant byte address 0x4 - core index']
  #allocation1 [shape = 'u32[144,128]{1,0:T(1,128)}', space=vmem, size = 0x12000, scoped, tag = 'internal scratch']
  %s0 = inlined_call_operand.vmem [shape: f32[48,64], index: 0, kind: input, shape index: {}]
  %s1 = inlined_call_operand.vmem [shape: f32[440,192], index: 1, kind: input, shape index: {}]
  %s2 = inlined_call_operand.vmem [shape: f32[16,128], index: 2, kind: output, shape index: {}]
  %s3 = sld [smem:[#allocation0]]
  $region18: #{posterior_n_forward.1} parent=0
    _
  %s5 = ssub.s32 1, %s3
  %s6 = scalar_select 0, %s5, %s3
  // Predicated region
  $region2: #{posterior_n_forward.1} parent=0 // pred_check
    _
  $region3: #{posterior_n_forward.1} parent=0 // pred_check_branch
    %8 = sbr.rel (0) target = $region5
  $region4: #{posterior_n_forward.1} parent=0 // pred_region
    _
  $region5: #{posterior_n_forward.1} parent=0 // pred_fallthru
    _
  // Predicated region
  $region6: #{posterior_n_forward.1} parent=0 // pred_check
    _
  $region7: #{posterior_n_forward.1} parent=0 // pred_check_branch
    %10 = sbr.rel (0) target = $region9
  $region8: #{posterior_n_forward.1} parent=0 // pred_region
    _
  $region9: #{posterior_n_forward.1} parent=0 // pred_fallthru
    _
  %v11 = vld [vmem:[%s0] sm:$0xff]
  %v12 = vld [vmem:[%s0 + $0x8] sm:$0xff]
  %v13 = vld [vmem:[%s0 + $0x10] sm:$0xff]
  %v14 = vld [vmem:[%s0 + $0x18] sm:$0xff]
  %v15 = vld [vmem:[%s0 + $0x20] sm:$0xff]
  %v16 = vld [vmem:[%s0 + $0x28] sm:$0xff]
  %v17 = vld [vmem:[%s1] sm:$0xff]
  %v18 = vld [vmem:[%s1 + $0x10] sm:$0xff]
  %v19 = vld [vmem:[%s1 + $0x20] sm:$0xff]
  %v20 = vld [vmem:[%s1 + $0x30] sm:$0xff]
  %v21 = vld [vmem:[%s1 + $0x360] ss:$0 sm:$0xff]
  %v22 = vld [vmem:[%s1 + $0x40] sm:$0xff]
  %v23 = vld [vmem:[%s1 + $0x50] sm:$0x3]
  %v24 = vld [vmem:[%s1 + $0x361] ss:$0 sm:$0xff]
  %v25 = vld [vmem:[%s1 + $0x60] sm:$0xff]
  %v26 = vld [vmem:[%s1 + $0x68] sm:$0xff]
  %v27 = vld [vmem:[%s1 + $0x70] sm:$0xff]
  %v28 = vld [vmem:[%s1 + $0x78] sm:$0xff]
  %v29 = vld [vmem:[%s1 + $0x80] sm:$0xff]
  %v30 = vld [vmem:[%s1 + $0x88] sm:$0xff]
  %v31 = vld [vmem:[%s1 + $0x90] sm:$0xff]
  %v32 = vld [vmem:[%s1 + $0x98] sm:$0xff]
  %v33 = vld [vmem:[%s1 + $0xa0] sm:$0xff]
  %v34 = vld [vmem:[%s1 + $0xa8] sm:$0xff]
  %v35 = vld [vmem:[%s1 + $0xb0] sm:$0xff]
  %v36 = vld [vmem:[%s1 + $0xb8] sm:$0xff]
  %v37 = vld [vmem:[%s1 + $0xc0] sm:$0xff]
  %v38 = vld [vmem:[%s1 + $0xc8] sm:$0xff]
  %v39 = vld [vmem:[%s1 + $0xd0] sm:$0xff]
  %v40 = vld [vmem:[%s1 + $0xd8] sm:$0xff]
  %v41 = vld [vmem:[%s1 + $0xe0] sm:$0xff]
  %v42 = vld [vmem:[%s1 + $0xf0] sm:$0xff]
  %v43 = vld [vmem:[%s1 + $0x100] sm:$0xff]
  %v44 = vld [vmem:[%s1 + $0x110] sm:$0xff]
  %v45 = vld [vmem:[%s1 + $0x120] sm:$0xff]
  %v46 = vld [vmem:[%s1 + $0x130] sm:$0xff]
  %v47 = vld [vmem:[%s1 + $0x140] sm:$0xff]
  %v48 = vld [vmem:[%s1 + $0x150] sm:$0xff]
  %v49 = vld [vmem:[%s1 + $0x160] sm:$0xff]
  %v50 = vld [vmem:[%s1 + $0x170] sm:$0xff]
  %v51 = vld [vmem:[%s1 + $0x180] sm:$0xff]
  %v52 = vld [vmem:[%s1 + $0x190] sm:$0xff]
  %v53 = vld [vmem:[%s1 + $0x1a0] sm:$0xff]
  %v54 = vld [vmem:[%s1 + $0x1b0] sm:$0xff]
  %v55 = vld [vmem:[%s1 + $0x1c0] sm:$0xff]
  %v56 = vld [vmem:[%s1 + $0x1d0] sm:$0xff]
  %v57 = vld [vmem:[%s1 + $0x362] ss:$0 sm:$0xff]
  %v58 = vld [vmem:[%s1 + $0x1e0] sm:$0xff]
  %v59 = vld [vmem:[%s1 + $0x1f0] sm:$0xff]
  %v60 = vld [vmem:[%s1 + $0x200] sm:$0xff]
  %v61 = vld [vmem:[%s1 + $0x210] sm:$0xff]
  %v62 = vld [vmem:[%s1 + $0x220] sm:$0xff]
  %v63 = vld [vmem:[%s1 + $0x230] sm:$0xff]
  %v64 = vld [vmem:[%s1 + $0x240] sm:$0xff]
  %v65 = vld [vmem:[%s1 + $0x250] sm:$0xff]
  %v66 = vld [vmem:[%s1 + $0x260] sm:$0xff]
  %v67 = vld [vmem:[%s1 + $0x270] sm:$0xff]
  %v68 = vld [vmem:[%s1 + $0x280] sm:$0xff]
  %v69 = vld [vmem:[%s1 + $0x290] sm:$0xff]
  %v70 = vld [vmem:[%s1 + $0x2a0] sm:$0xff]
  %v71 = vld [vmem:[%s1 + $0x2b0] sm:$0xff]
  %v72 = vld [vmem:[%s1 + $0x2c0] sm:$0xff]
  %v73 = vld [vmem:[%s1 + $0x2d0] sm:$0xff]
  %v74 = vld [vmem:[%s1 + $0x363] ss:$0 sm:$0xff]
  %v75 = vld [vmem:[%s1 + $0x2e0] sm:$0xff]
  %v76 = vld [vmem:[%s1 + $0x2f0] sm:$0xff]
  %v77 = vld [vmem:[%s1 + $0x300] sm:$0xff]
  %v78 = vld [vmem:[%s1 + $0x310] sm:$0xff]
  %v79 = vld [vmem:[%s1 + $0x320] sm:$0xff]
  %v80 = vld [vmem:[%s1 + $0x330] sm:$0xff]
  %v81 = vld [vmem:[%s1 + $0x340] sm:$0xff]
  %v82 = vld [vmem:[%s1 + $0x350] sm:$0xff]
  %v83 = vld [vmem:[%s1 + $0x364] ss:$0 sm:$0xff]
  %vm84 = vcmask 261120
  %v86 = vsel %vm84, %v11, 0
  %v89 = vsel %vm84, %v12, 0
  %91 = vmatprep.subr.mxu0 0.0
  %92 = vmatpush1.msra.mxu0 %v17
  %93 = vmatprep.subr.mxu0 0.0
  %94 = vmatpush1.msra.mxu0 %v18
  %95 = vmatprep.subr.mxu0 0.0
  %96 = vmatpush1.msra.mxu0 %v19
  %97 = vmatprep.subr.mxu0 0.0
  %98 = vmatpush1.msra.mxu0 %v20
  %99 = vmatprep.subr.mxu0 0.0
  %100 = vmatpush1.msra.mxu0 0.0
  %101 = vmatprep.subr.mxu0 0.0
  %102 = vmatpush1.msra.mxu0 0.0
  %103 = vmatprep.subr.mxu0 0.0
  %104 = vmatpush1.msra.mxu0 0.0
  %105 = vmatprep.subr.mxu0 0.0
  %106 = vmatpush1.msra.mxu0 0.0
  %107 = vmatprep.subr.mxu0 0.0
  %108 = vmatpush1.msra.mxu0 0.0
  %109 = vmatprep.subr.mxu0 0.0
  %110 = vmatpush1.msra.mxu0 0.0
  %111 = vmatprep.subr.mxu0 0.0
  %112 = vmatpush1.msra.mxu0 0.0
  %113 = vmatprep.subr.mxu0 0.0
  %114 = vmatpush1.msra.mxu0 0.0
  %115 = vmatprep.subr.mxu0 0.0
  %116 = vmatpush1.msra.mxu0 0.0
  %117 = vmatprep.subr.mxu0 0.0
  %118 = vmatpush1.msra.mxu0 0.0
  %119 = vmatprep.subr.mxu0 0.0
  %120 = vmatpush1.msra.mxu0 0.0
  %121 = vmatprep.subr.mxu0 0.0
  %122 = vmatpush1.msra.mxu0 0.0
  %123 = vmatprep.subr.mxu0 0.0
  %124 = vmatpush1.msra.mxu0 0.0
  %125 = vmatprep.subr.mxu0 0.0
  %126 = vmatpush1.msra.mxu0 0.0
  %127 = vmatprep.subr.mxu0 0.0
  %128 = vmatpush1.msra.mxu0 0.0
  %129 = vmatprep.subr.mxu0 0.0
  %130 = vmatpush1.msra.mxu0 0.0
  %131 = vmatprep.subr.mxu0 0.0
  %132 = vmatpush1.msra.mxu0 0.0
  %133 = vmatprep.subr.mxu0 0.0
  %134 = vmatpush1.msra.mxu0 0.0
  %135 = vmatprep.subr.mxu0 0.0
  %136 = vmatpush1.msra.mxu0 0.0
  %137 = vmatprep.subr.mxu0 0.0
  %138 = vmatpush1.msra.mxu0 0.0
  %139 = vmatprep.subr.mxu0 0.0
  %140 = vmatpush1.msra.mxu0 0.0
  %141 = vmatprep.subr.mxu0 0.0
  %142 = vmatpush1.msra.mxu0 0.0
  %143 = vmatprep.subr.mxu0 0.0
  %144 = vmatpush1.msra.mxu0 0.0
  %145 = vmatprep.subr.mxu0 0.0
  %146 = vmatpush1.msra.mxu0 0.0
  %147 = vmatprep.subr.mxu0 0.0
  %148 = vmatpush1.msra.mxu0 0.0
  %149 = vmatprep.subr.mxu0 0.0
  %150 = vmatpush1.msra.mxu0 0.0
  %151 = vmatprep.subr.mxu0 0.0
  %152 = vmatpush1.msra.mxu0 0.0
  %153 = vmatprep.subr.mxu0 0.0
  %154 = vmatpush1.msra.mxu0 0.0
  %155 = vmatprep.mubr.f32.mxu0 0.0
  %156 = vmatmul.mubr.f32.gmra.mrb[0].mxu0 %v86
  %v157 = vpop.f32.mrb[0].mxu0
  %v158 = vadd.f32 %v21, %v157
  %v159 = vpop.f32.mrb[0].mxu0
  %160 = vmatprep.mubr.f32.mxu0 0.0
  %161 = vmatmul.mubr.f32.gmra.mrb[0].mxu0 %v89
  %v162 = vpop.f32.mrb[0].mxu0
  %v163 = vadd.f32 %v21, %v162
  %v164 = vpop.f32.mrb[0].mxu0
  %165 = vdwg.mxu0
  %vm166 = vcmask 343296
  %v167 = vsel %vm166, %v158, -inf
  %168 = vmax.xlane.f32.xlu0 %v167
  %v169 = vpop.xlane.xlu0 %168
  %v170 = vsel %vm166, %v163, -inf
  %171 = vmax.xlane.f32.xlu0 %v170
  %v172 = vpop.xlane.xlu0 %171
  %v173 = vsub.f32 %v158, %v169
  %v174 = vsub.f32 %v163, %v172
  %v175 = vmul.f32 %v173, 1.442695
  %v176 = vpow.pop %v175
  %v177 = vmul.f32 %v174, 1.442695
  %v178 = vpow.pop %v177
  %181 = vrot.lane.b32.xlu0 %v176, 96
  %v182 = vpop.permute.xlu0 %181
  %183 = vrot.lane.b32.xlu0 %v178, 96
  %v184 = vpop.permute.xlu0 %183
  %vm187 = vcmask 80896
  %v188 = vsel %vm187, %v182, 0.0
  %189 = vadd.xlane.f32.xlu0 %v188
  %v190 = vpop.xlane.xlu0 %189
  %v191 = vsel %vm187, %v184, 0.0
  %192 = vadd.xlane.f32.xlu0 %v191
  %v193 = vpop.xlane.xlu0 %192
  %v194 = vrcp.pop %v190
  %v195 = vrcp.pop %v193
  %v196 = vmul.f32 %v176, %v194
  %v197 = vmul.f32 %v178, %v195
  %v198 = vsel %vm166, %v196, -inf
  %199 = vmax.xlane.f32.xlu0 %v198
  %v200 = vpop.xlane.xlu0 %199
  %v201 = vsel %vm166, %v197, -inf
  %202 = vmax.xlane.f32.xlu0 %v201
  %v203 = vpop.xlane.xlu0 %202
  %v204 = vlaneseq
  %v205 = vand.u32 %v204, 127
  %vm206 = vcmp.ge.f32.partialorder %v196, %v200
  %vm207 = vcmp.ge.f32.partialorder %v197, %v203
  %208 = vrot.lane.b32.xlu0 %v205, 32
  %v209 = vpop.permute.xlu0 %208
  %v210 = vsel %vm206, %v209, 10
  %v211 = vsel %vm207, %v209, 10
  %v212 = vsel %vm166, %v210, 2147483647
  %v213 = vand.u32 %v212, 65535
  %v214 = vshra.s32 %v212, 16
  %v215 = vcvt.s32.f32 %v213
  %v216 = vcvt.s32.f32 %v214
  %217 = vmin.xlane.f32.xlu0 %v216
  %v218 = vpop.xlane.xlu0 %217
  %vm219 = vcmp.eq.f32.partialorder %v216, %v218
  %v220 = vsel %vm219, %v215, inf
  %221 = vmin.xlane.f32.xlu0 %v220
  %v222 = vpop.xlane.xlu0 %221
  %v223 = vcvt.f32.s32 %v222
  %v224 = vcvt.f32.s32 %v218
  %v225 = vshll.u32 %v224, 16
  %v226 = vadd.s32 %v225, %v223
  %v227 = vsel %vm166, %v211, 2147483647
  %v228 = vand.u32 %v227, 65535
  %v229 = vshra.s32 %v227, 16
  %v230 = vcvt.s32.f32 %v228
  %v231 = vcvt.s32.f32 %v229
  %232 = vmin.xlane.f32.xlu0 %v231
  %v233 = vpop.xlane.xlu0 %232
  %vm234 = vcmp.eq.f32.partialorder %v231, %v233
  %v235 = vsel %vm234, %v230, inf
  %236 = vmin.xlane.f32.xlu0 %v235
  %v237 = vpop.xlane.xlu0 %236
  %v238 = vcvt.f32.s32 %v237
  %v239 = vcvt.f32.s32 %v233
  %v240 = vshll.u32 %v239, 16
  %v241 = vadd.s32 %v240, %v238
  %vm242 = vcmp.eq.f32.partialorder %v11, 0.0
  %vm243 = vcmp.eq.f32.partialorder %v12, 0.0
  %v244 = vsel %vm242, 0, %v226
  %v245 = vsel %vm243, 0, %v241
  %vm246 = vcmp.lt.f32.partialorder %v200, 0.7
  %vm247 = vcmp.lt.f32.partialorder %v203, 0.7
  %vm248 = vcmp.gt.f32.partialorder %v11, 0.5
  %vm249 = vcmp.gt.f32.partialorder %v12, 0.5
  %vm250 = vmand %vm246, %vm248
  %vm251 = vmand %vm247, %vm249
  %252 = vset.pattern.permute.xlu0 32
  %253 = vperm.xlu0 %252, %v11
  %v254 = vpop.permute.xlu0 %253
  %256 = vset.pattern.permute.xlu0 32
  %257 = vperm.xlu0 %256, %v12
  %v258 = vpop.permute.xlu0 %257
  %v260 = vmul.f32 %v196, %v254
  %v261 = vmul.f32 %v197, %v258
  %264 = vrot.lane.b32.xlu0 %v260, 96
  %v265 = vpop.permute.xlu0 %264
  %266 = vrot.lane.b32.xlu0 %v261, 96
  %v267 = vpop.permute.xlu0 %266
  %v268 = vsel %vm187, %v265, 0
  %v270 = vsel %vm187, %v267, 0
  %vm272 = vcmask 1041408
  %v274 = vsel %vm272, %v23, 0
  %276 = vmatprep.subr.mxu0 0.0
  %277 = vmatpush1.msra.mxu0 %v22
  %278 = vmatprep.subr.mxu0 0.0
  %279 = vmatpush1.msra.mxu0 %v274
  %280 = vmatprep.subr.mxu0 0.0
  %281 = vmatpush1.msra.mxu0 0.0
  %282 = vmatprep.subr.mxu0 0.0
  %283 = vmatpush1.msra.mxu0 0.0
  %284 = vmatprep.subr.mxu0 0.0
  %285 = vmatpush1.msra.mxu0 0.0
  %286 = vmatprep.subr.mxu0 0.0
  %287 = vmatpush1.msra.mxu0 0.0
  %288 = vmatprep.subr.mxu0 0.0
  %289 = vmatpush1.msra.mxu0 0.0
  %290 = vmatprep.subr.mxu0 0.0
  %291 = vmatpush1.msra.mxu0 0.0
  %292 = vmatprep.subr.mxu0 0.0
  %293 = vmatpush1.msra.mxu0 0.0
  %294 = vmatprep.subr.mxu0 0.0
  %295 = vmatpush1.msra.mxu0 0.0
  %296 = vmatprep.subr.mxu0 0.0
  %297 = vmatpush1.msra.mxu0 0.0
  %298 = vmatprep.subr.mxu0 0.0
  %299 = vmatpush1.msra.mxu0 0.0
  %300 = vmatprep.subr.mxu0 0.0
  %301 = vmatpush1.msra.mxu0 0.0
  %302 = vmatprep.subr.mxu0 0.0
  %303 = vmatpush1.msra.mxu0 0.0
  %304 = vmatprep.subr.mxu0 0.0
  %305 = vmatpush1.msra.mxu0 0.0
  %306 = vmatprep.subr.mxu0 0.0
  %307 = vmatpush1.msra.mxu0 0.0
  %308 = vmatprep.subr.mxu0 0.0
  %309 = vmatpush1.msra.mxu0 0.0
  %310 = vmatprep.subr.mxu0 0.0
  %311 = vmatpush1.msra.mxu0 0.0
  %312 = vmatprep.subr.mxu0 0.0
  %313 = vmatpush1.msra.mxu0 0.0
  %314 = vmatprep.subr.mxu0 0.0
  %315 = vmatpush1.msra.mxu0 0.0
  %316 = vmatprep.subr.mxu0 0.0
  %317 = vmatpush1.msra.mxu0 0.0
  %318 = vmatprep.subr.mxu0 0.0
  %319 = vmatpush1.msra.mxu0 0.0
  %320 = vmatprep.subr.mxu0 0.0
  %321 = vmatpush1.msra.mxu0 0.0
  %322 = vmatprep.subr.mxu0 0.0
  %323 = vmatpush1.msra.mxu0 0.0
  %324 = vmatprep.subr.mxu0 0.0
  %325 = vmatpush1.msra.mxu0 0.0
  %326 = vmatprep.subr.mxu0 0.0
  %327 = vmatpush1.msra.mxu0 0.0
  %328 = vmatprep.subr.mxu0 0.0
  %329 = vmatpush1.msra.mxu0 0.0
  %330 = vmatprep.subr.mxu0 0.0
  %331 = vmatpush1.msra.mxu0 0.0
  %332 = vmatprep.subr.mxu0 0.0
  %333 = vmatpush1.msra.mxu0 0.0
  %334 = vmatprep.subr.mxu0 0.0
  %335 = vmatpush1.msra.mxu0 0.0
  %336 = vmatprep.subr.mxu0 0.0
  %337 = vmatpush1.msra.mxu0 0.0
  %338 = vmatprep.subr.mxu0 0.0
  %339 = vmatpush1.msra.mxu0 0.0
  %340 = vmatprep.mubr.f32.mxu0 0.0
  %341 = vmatmul.mubr.f32.gmra.mrb[0].mxu0 %v268
  %v342 = vpop.f32.mrb[0].mxu0
  %v343 = vadd.f32 %v24, %v342
  %v344 = vpop.f32.mrb[0].mxu0
  %345 = vmatprep.mubr.f32.mxu0 0.0
  %346 = vmatmul.mubr.f32.gmra.mrb[0].mxu0 %v270
  %v347 = vpop.f32.mrb[0].mxu0
  %v348 = vadd.f32 %v24, %v347
  %v349 = vpop.f32.mrb[0].mxu0
  %350 = vdwg.mxu0
  %353 = vrot.lane.b32.xlu0 %v343, 32
  %v354 = vpop.permute.xlu0 %353
  %355 = vrot.lane.b32.xlu0 %v348, 32
  %v356 = vpop.permute.xlu0 %355
  %v359 = vsel %vm84, %v158, %v354
  %v360 = vsel %vm84, %v163, %v356
  %vm361 = vcmask 523264
  %v363 = vsel %vm361, %v359, 0
  %v366 = vsel %vm361, %v360, 0
  %368 = vmatprep.subr.mxu0 %v26
  %369 = vmatpush1.msra.mxu0 %v25
  %370 = vmatprep.subr.mxu0 %v28
  %371 = vmatpush1.msra.mxu0 %v27
  %372 = vmatprep.subr.mxu0 %v30
  %373 = vmatpush1.msra.mxu0 %v29
  %374 = vmatprep.subr.mxu0 %v32
  %375 = vmatpush1.msra.mxu0 %v31
  %376 = vmatprep.subr.mxu0 %v34
  %377 = vmatpush1.msra.mxu0 %v33
  %378 = vmatprep.subr.mxu0 %v36
  %379 = vmatpush1.msra.mxu0 %v35
  %380 = vmatprep.subr.mxu0 %v38
  %381 = vmatpush1.msra.mxu0 %v37
  %382 = vmatprep.subr.mxu0 %v40
  %383 = vmatpush1.msra.mxu0 %v39
  %384 = vmatprep.subr.mxu0 0.0
  %385 = vmatpush1.msra.mxu0 0.0
  %386 = vmatprep.subr.mxu0 0.0
  %387 = vmatpush1.msra.mxu0 0.0
  %388 = vmatprep.subr.mxu0 0.0
  %389 = vmatpush1.msra.mxu0 0.0
  %390 = vmatprep.subr.mxu0 0.0
  %391 = vmatpush1.msra.mxu0 0.0
  %392 = vmatprep.subr.mxu0 0.0
  %393 = vmatpush1.msra.mxu0 0.0
  %394 = vmatprep.subr.mxu0 0.0
  %395 = vmatpush1.msra.mxu0 0.0
  %396 = vmatprep.subr.mxu0 0.0
  %397 = vmatpush1.msra.mxu0 0.0
  %398 = vmatprep.subr.mxu0 0.0
  %399 = vmatpush1.msra.mxu0 0.0
  %400 = vmatprep.subr.mxu0 0.0
  %401 = vmatpush1.msra.mxu0 0.0
  %402 = vmatprep.subr.mxu0 0.0
  %403 = vmatpush1.msra.mxu0 0.0
  %404 = vmatprep.subr.mxu0 0.0
  %405 = vmatpush1.msra.mxu0 0.0
  %406 = vmatprep.subr.mxu0 0.0
  %407 = vmatpush1.msra.mxu0 0.0
  %408 = vmatprep.subr.mxu0 0.0
  %409 = vmatpush1.msra.mxu0 0.0
  %410 = vmatprep.subr.mxu0 0.0
  %411 = vmatpush1.msra.mxu0 0.0
  %412 = vmatprep.subr.mxu0 0.0
  %413 = vmatpush1.msra.mxu0 0.0
  %414 = vmatprep.subr.mxu0 0.0
  %415 = vmatpush1.msra.mxu0 0.0
  %416 = vmatprep.subr.mxu0 0.0
  %417 = vmatpush1.msra.mxu0 0.0
  %418 = vmatprep.subr.mxu0 0.0
  %419 = vmatpush1.msra.mxu0 0.0
  %420 = vmatprep.subr.mxu0 0.0
  %421 = vmatpush1.msra.mxu0 0.0
  %422 = vmatprep.subr.mxu0 0.0
  %423 = vmatpush1.msra.mxu0 0.0
  %424 = vmatprep.subr.mxu0 0.0
  %425 = vmatpush1.msra.mxu0 0.0
  %426 = vmatprep.subr.mxu0 0.0
  %427 = vmatpush1.msra.mxu0 0.0
  %428 = vmatprep.subr.mxu0 0.0
  %429 = vmatpush1.msra.mxu0 0.0
  %430 = vmatprep.subr.mxu0 0.0
  %431 = vmatpush1.msra.mxu0 0.0
  %432 = vmatprep.mubr.f32.mxu0 0.0
  %433 = vmatmul.mubr.f32.gmra.mrb[0].mxu0 %v363
  %v434 = vpop.f32.mrb[0].mxu0
  %v435 = vadd.f32 0.0, %v434
  %v436 = vpop.f32.mrb[0].mxu0
  %v437 = vadd.f32 0.0, %v436
  %438 = vmatprep.mubr.f32.mxu0 0.0
  %439 = vmatmul.mubr.f32.gmra.mrb[0].mxu0 %v366
  %v440 = vpop.f32.mrb[0].mxu0
  %v441 = vadd.f32 0.0, %v440
  %v442 = vpop.f32.mrb[0].mxu0
  %v443 = vadd.f32 0.0, %v442
  %444 = vdwg.mxu0
  %447 = vrot.lane.b32.xlu0 %v435, 32
  %v448 = vpop.permute.xlu0 %447
  %449 = vrot.lane.b32.xlu0 %v441, 32
  %v450 = vpop.permute.xlu0 %449
  %453 = vrot.lane.b32.xlu0 %v437, 32
  %v454 = vpop.permute.xlu0 %453
  %455 = vrot.lane.b32.xlu0 %v443, 32
  %v456 = vpop.permute.xlu0 %455
  %457 = vrot.lane.b32.xlu0 %v435, 96
  %v458 = vpop.permute.xlu0 %457
  %459 = vrot.lane.b32.xlu0 %v441, 96
  %v460 = vpop.permute.xlu0 %459
  %461 = vrot.lane.b32.xlu0 %v454, 96
  %v462 = vpop.permute.xlu0 %461
  %463 = vrot.lane.b32.xlu0 %v456, 96
  %v464 = vpop.permute.xlu0 %463
  %v465 = vsel %vm84, %v435, 0
  %v467 = vsel %vm84, %v441, 0
  %v469 = vsel %vm84, %v448, 0
  %v471 = vsel %vm84, %v450, 0
  %v473 = vsel %vm84, %v458, 0
  %v475 = vsel %vm84, %v460, 0
  %v477 = vsel %vm84, %v462, 0
  %v479 = vsel %vm84, %v464, 0
  %481 = vmatprep.subr.mxu0 0.0
  %482 = vmatpush1.xpose.msra.mxu0 %v473
  %483 = vmatprep.subr.mxu0 0.0
  %484 = vmatpush1.xpose.msra.mxu0 %v475
  %485 = vmatprep.subr.mxu0 0.0
  %486 = vmatpush1.xpose.msra.mxu0 %v477
  %487 = vmatprep.subr.mxu0 0.0
  %488 = vmatpush1.xpose.msra.mxu0 %v479
  %489 = vmatprep.subr.mxu0 0.0
  %490 = vmatpush1.xpose.msra.mxu0 0.0
  %491 = vmatprep.subr.mxu0 0.0
  %492 = vmatpush1.xpose.msra.mxu0 0.0
  %493 = vmatprep.subr.mxu0 0.0
  %494 = vmatpush1.xpose.msra.mxu0 0.0
  %495 = vmatprep.subr.mxu0 0.0
  %496 = vmatpush1.xpose.msra.mxu0 0.0
  %497 = vmatprep.subr.mxu0 0.0
  %498 = vmatpush1.xpose.msra.mxu0 0.0
  %499 = vmatprep.subr.mxu0 0.0
  %500 = vmatpush1.xpose.msra.mxu0 0.0
  %501 = vmatprep.subr.mxu0 0.0
  %502 = vmatpush1.xpose.msra.mxu0 0.0
  %503 = vmatprep.subr.mxu0 0.0
  %504 = vmatpush1.xpose.msra.mxu0 0.0
  %505 = vmatprep.subr.mxu0 0.0
  %506 = vmatpush1.xpose.msra.mxu0 0.0
  %507 = vmatprep.subr.mxu0 0.0
  %508 = vmatpush1.xpose.msra.mxu0 0.0
  %509 = vmatprep.subr.mxu0 0.0
  %510 = vmatpush1.xpose.msra.mxu0 0.0
  %511 = vmatprep.subr.mxu0 0.0
  %512 = vmatpush1.xpose.msra.mxu0 0.0
  %513 = vmatprep.subr.mxu0 0.0
  %514 = vmatpush1.xpose.msra.mxu0 0.0
  %515 = vmatprep.subr.mxu0 0.0
  %516 = vmatpush1.xpose.msra.mxu0 0.0
  %517 = vmatprep.subr.mxu0 0.0
  %518 = vmatpush1.xpose.msra.mxu0 0.0
  %519 = vmatprep.subr.mxu0 0.0
  %520 = vmatpush1.xpose.msra.mxu0 0.0
  %521 = vmatprep.subr.mxu0 0.0
  %522 = vmatpush1.xpose.msra.mxu0 0.0
  %523 = vmatprep.subr.mxu0 0.0
  %524 = vmatpush1.xpose.msra.mxu0 0.0
  %525 = vmatprep.subr.mxu0 0.0
  %526 = vmatpush1.xpose.msra.mxu0 0.0
  %527 = vmatprep.subr.mxu0 0.0
  %528 = vmatpush1.xpose.msra.mxu0 0.0
  %529 = vmatprep.subr.mxu0 0.0
  %530 = vmatpush1.xpose.msra.mxu0 0.0
  %531 = vmatprep.subr.mxu0 0.0
  %532 = vmatpush1.xpose.msra.mxu0 0.0
  %533 = vmatprep.subr.mxu0 0.0
  %534 = vmatpush1.xpose.msra.mxu0 0.0
  %535 = vmatprep.subr.mxu0 0.0
  %536 = vmatpush1.xpose.msra.mxu0 0.0
  %537 = vmatprep.subr.mxu0 0.0
  %538 = vmatpush1.xpose.msra.mxu0 0.0
  %539 = vmatprep.subr.mxu0 0.0
  %540 = vmatpush1.xpose.msra.mxu0 0.0
  %541 = vmatprep.subr.mxu0 0.0
  %542 = vmatpush1.xpose.msra.mxu0 0.0
  %543 = vmatprep.subr.mxu0 0.0
  %544 = vmatpush1.xpose.msra.mxu0 0.0
  %545 = vmatprep.mubr.f32.mxu0 0.0
  %546 = vmatmul.mubr.f32.gmra.mrb[0].mxu0 %v465
  %v547 = vpop.f32.mrb[0].mxu0
  %v548 = vadd.f32 0.0, %v547
  %v549 = vpop.f32.mrb[0].mxu0
  %550 = vmatprep.mubr.f32.mxu0 0.0
  %551 = vmatmul.mubr.f32.gmra.mrb[0].mxu0 %v467
  %v552 = vpop.f32.mrb[0].mxu0
  %v553 = vadd.f32 0.0, %v552
  %v554 = vpop.f32.mrb[0].mxu0
  %555 = vmatprep.mubr.f32.mxu0 0.0
  %556 = vmatmul.mubr.f32.gmra.mrb[0].mxu0 %v469
  %v557 = vpop.f32.mrb[0].mxu0
  %v558 = vadd.f32 0.0, %v557
  %v559 = vpop.f32.mrb[0].mxu0
  %560 = vmatprep.mubr.f32.mxu0 0.0
  %561 = vmatmul.mubr.f32.gmra.mrb[0].mxu0 %v471
  %v562 = vpop.f32.mrb[0].mxu0
  %v563 = vadd.f32 0.0, %v562
  %v564 = vpop.f32.mrb[0].mxu0
  %565 = vdwg.mxu0
  %v566 = vmul.f32 %v548, 0.17677669
  %v567 = vmul.f32 %v553, 0.17677669
  %v568 = vmul.f32 %v558, 0.17677669
  %v569 = vmul.f32 %v563, 0.17677669
  %v570 = vadd.f32 %v566, %v13
  %v571 = vadd.f32 %v567, %v14
  %v572 = vadd.f32 %v568, %v15
  %v573 = vadd.f32 %v569, %v16
  %v574 = vsel %vm84, %v570, -inf
  %575 = vmax.xlane.f32.xlu0 %v574
  %v576 = vpop.xlane.xlu0 %575
  %v577 = vsel %vm84, %v571, -inf
  %578 = vmax.xlane.f32.xlu0 %v577
  %v579 = vpop.xlane.xlu0 %578
  %v580 = vsel %vm84, %v572, -inf
  %581 = vmax.xlane.f32.xlu0 %v580
  %v582 = vpop.xlane.xlu0 %581
  %v583 = vsel %vm84, %v573, -inf
  %584 = vmax.xlane.f32.xlu0 %v583
  %v585 = vpop.xlane.xlu0 %584
  %v586 = vsub.f32 %v570, %v576
  %v587 = vsub.f32 %v571, %v579
  %v588 = vsub.f32 %v572, %v582
  %v589 = vsub.f32 %v573, %v585
  %v590 = vmul.f32 %v586, 1.442695
  %v591 = vpow.pop %v590
  %v592 = vmul.f32 %v587, 1.442695
  %v593 = vpow.pop %v592
  %v594 = vmul.f32 %v588, 1.442695
  %v595 = vpow.pop %v594
  %v596 = vmul.f32 %v589, 1.442695
  %v597 = vpow.pop %v596
  %v598 = vsel %vm84, %v591, 0.0
  %599 = vadd.xlane.f32.xlu0 %v598
  %v600 = vpop.xlane.xlu0 %599
  %v601 = vsel %vm84, %v593, 0.0
  %602 = vadd.xlane.f32.xlu0 %v601
  %v603 = vpop.xlane.xlu0 %602
  %v604 = vsel %vm84, %v595, 0.0
  %605 = vadd.xlane.f32.xlu0 %v604
  %v606 = vpop.xlane.xlu0 %605
  %v607 = vsel %vm84, %v597, 0.0
  %608 = vadd.xlane.f32.xlu0 %v607
  %v609 = vpop.xlane.xlu0 %608
  %v610 = vrcp.pop %v600
  %v611 = vrcp.pop %v603
  %v612 = vrcp.pop %v606
  %v613 = vrcp.pop %v609
  %v614 = vmul.f32 %v591, %v610
  %v615 = vmul.f32 %v593, %v611
  %v616 = vmul.f32 %v595, %v612
  %v617 = vmul.f32 %v597, %v613
  %618 = vrot.lane.b32.xlu0 %v435, 64
  %v619 = vpop.permute.xlu0 %618
  %620 = vrot.lane.b32.xlu0 %v441, 64
  %v621 = vpop.permute.xlu0 %620
  %622 = vrot.lane.b32.xlu0 %v454, 64
  %v623 = vpop.permute.xlu0 %622
  %624 = vrot.lane.b32.xlu0 %v456, 64
  %v625 = vpop.permute.xlu0 %624
  %v631 = vsel %vm84, %v614, 0
  %v634 = vsel %vm84, %v615, 0
  %v637 = vsel %vm84, %v616, 0
  %v640 = vsel %vm84, %v617, 0
  %642 = vmatprep.subr.mxu0 0.0
  %643 = vmatpush1.msra.mxu0 %v619
  %644 = vmatprep.subr.mxu0 0.0
  %645 = vmatpush1.msra.mxu0 %v621
  %646 = vmatprep.subr.mxu0 0.0
  %647 = vmatpush1.msra.mxu0 %v623
  %648 = vmatprep.subr.mxu0 0.0
  %649 = vmatpush1.msra.mxu0 %v625
  %650 = vmatprep.subr.mxu0 0.0
  %651 = vmatpush1.msra.mxu0 0.0
  %652 = vmatprep.subr.mxu0 0.0
  %653 = vmatpush1.msra.mxu0 0.0
  %654 = vmatprep.subr.mxu0 0.0
  %655 = vmatpush1.msra.mxu0 0.0
  %656 = vmatprep.subr.mxu0 0.0
  %657 = vmatpush1.msra.mxu0 0.0
  %658 = vmatprep.subr.mxu0 0.0
  %659 = vmatpush1.msra.mxu0 0.0
  %660 = vmatprep.subr.mxu0 0.0
  %661 = vmatpush1.msra.mxu0 0.0
  %662 = vmatprep.subr.mxu0 0.0
  %663 = vmatpush1.msra.mxu0 0.0
  %664 = vmatprep.subr.mxu0 0.0
  %665 = vmatpush1.msra.mxu0 0.0
  %666 = vmatprep.subr.mxu0 0.0
  %667 = vmatpush1.msra.mxu0 0.0
  %668 = vmatprep.subr.mxu0 0.0
  %669 = vmatpush1.msra.mxu0 0.0
  %670 = vmatprep.subr.mxu0 0.0
  %671 = vmatpush1.msra.mxu0 0.0
  %672 = vmatprep.subr.mxu0 0.0
  %673 = vmatpush1.msra.mxu0 0.0
  %674 = vmatprep.subr.mxu0 0.0
  %675 = vmatpush1.msra.mxu0 0.0
  %676 = vmatprep.subr.mxu0 0.0
  %677 = vmatpush1.msra.mxu0 0.0
  %678 = vmatprep.subr.mxu0 0.0
  %679 = vmatpush1.msra.mxu0 0.0
  %680 = vmatprep.subr.mxu0 0.0
  %681 = vmatpush1.msra.mxu0 0.0
  %682 = vmatprep.subr.mxu0 0.0
  %683 = vmatpush1.msra.mxu0 0.0
  %684 = vmatprep.subr.mxu0 0.0
  %685 = vmatpush1.msra.mxu0 0.0
  %686 = vmatprep.subr.mxu0 0.0
  %687 = vmatpush1.msra.mxu0 0.0
  %688 = vmatprep.subr.mxu0 0.0
  %689 = vmatpush1.msra.mxu0 0.0
  %690 = vmatprep.subr.mxu0 0.0
  %691 = vmatpush1.msra.mxu0 0.0
  %692 = vmatprep.subr.mxu0 0.0
  %693 = vmatpush1.msra.mxu0 0.0
  %694 = vmatprep.subr.mxu0 0.0
  %695 = vmatpush1.msra.mxu0 0.0
  %696 = vmatprep.subr.mxu0 0.0
  %697 = vmatpush1.msra.mxu0 0.0
  %698 = vmatprep.subr.mxu0 0.0
  %699 = vmatpush1.msra.mxu0 0.0
  %700 = vmatprep.subr.mxu0 0.0
  %701 = vmatpush1.msra.mxu0 0.0
  %702 = vmatprep.subr.mxu0 0.0
  %703 = vmatpush1.msra.mxu0 0.0
  %704 = vmatprep.subr.mxu0 0.0
  %705 = vmatpush1.msra.mxu0 0.0
  %706 = vmatprep.mubr.f32.mxu0 0.0
  %707 = vmatmul.mubr.f32.gmra.mrb[0].mxu0 %v631
  %v708 = vpop.f32.mrb[0].mxu0
  %v709 = vadd.f32 0.0, %v708
  %v710 = vpop.f32.mrb[0].mxu0
  %711 = vmatprep.mubr.f32.mxu0 0.0
  %712 = vmatmul.mubr.f32.gmra.mrb[0].mxu0 %v634
  %v713 = vpop.f32.mrb[0].mxu0
  %v714 = vadd.f32 0.0, %v713
  %v715 = vpop.f32.mrb[0].mxu0
  %716 = vmatprep.mubr.f32.mxu0 0.0
  %717 = vmatmul.mubr.f32.gmra.mrb[0].mxu0 %v637
  %v718 = vpop.f32.mrb[0].mxu0
  %v719 = vadd.f32 0.0, %v718
  %v720 = vpop.f32.mrb[0].mxu0
  %721 = vmatprep.mubr.f32.mxu0 0.0
  %722 = vmatmul.mubr.f32.gmra.mrb[0].mxu0 %v640
  %v723 = vpop.f32.mrb[0].mxu0
  %v724 = vadd.f32 0.0, %v723
  %v725 = vpop.f32.mrb[0].mxu0
  %726 = vdwg.mxu0
  %729 = vrot.lane.b32.xlu0 %v719, 32
  %v730 = vpop.permute.xlu0 %729
  %731 = vrot.lane.b32.xlu0 %v724, 32
  %v732 = vpop.permute.xlu0 %731
  %v735 = vsel %vm84, %v709, %v730
  %v736 = vsel %vm84, %v714, %v732
  %v738 = vsel %vm361, %v735, 0
  %v741 = vsel %vm361, %v736, 0
  %743 = vmatprep.subr.mxu0 0.0
  %744 = vmatpush1.msra.mxu0 %v41
  %745 = vmatprep.subr.mxu0 0.0
  %746 = vmatpush1.msra.mxu0 %v42
  %747 = vmatprep.subr.mxu0 0.0
  %748 = vmatpush1.msra.mxu0 %v43
  %749 = vmatprep.subr.mxu0 0.0
  %750 = vmatpush1.msra.mxu0 %v44
  %751 = vmatprep.subr.mxu0 0.0
  %752 = vmatpush1.msra.mxu0 %v45
  %753 = vmatprep.subr.mxu0 0.0
  %754 = vmatpush1.msra.mxu0 %v46
  %755 = vmatprep.subr.mxu0 0.0
  %756 = vmatpush1.msra.mxu0 %v47
  %757 = vmatprep.subr.mxu0 0.0
  %758 = vmatpush1.msra.mxu0 %v48
  %759 = vmatprep.subr.mxu0 0.0
  %760 = vmatpush1.msra.mxu0 0.0
  %761 = vmatprep.subr.mxu0 0.0
  %762 = vmatpush1.msra.mxu0 0.0
  %763 = vmatprep.subr.mxu0 0.0
  %764 = vmatpush1.msra.mxu0 0.0
  %765 = vmatprep.subr.mxu0 0.0
  %766 = vmatpush1.msra.mxu0 0.0
  %767 = vmatprep.subr.mxu0 0.0
  %768 = vmatpush1.msra.mxu0 0.0
  %769 = vmatprep.subr.mxu0 0.0
  %770 = vmatpush1.msra.mxu0 0.0
  %771 = vmatprep.subr.mxu0 0.0
  %772 = vmatpush1.msra.mxu0 0.0
  %773 = vmatprep.subr.mxu0 0.0
  %774 = vmatpush1.msra.mxu0 0.0
  %775 = vmatprep.subr.mxu0 0.0
  %776 = vmatpush1.msra.mxu0 0.0
  %777 = vmatprep.subr.mxu0 0.0
  %778 = vmatpush1.msra.mxu0 0.0
  %779 = vmatprep.subr.mxu0 0.0
  %780 = vmatpush1.msra.mxu0 0.0
  %781 = vmatprep.subr.mxu0 0.0
  %782 = vmatpush1.msra.mxu0 0.0
  %783 = vmatprep.subr.mxu0 0.0
  %784 = vmatpush1.msra.mxu0 0.0
  %785 = vmatprep.subr.mxu0 0.0
  %786 = vmatpush1.msra.mxu0 0.0
  %787 = vmatprep.subr.mxu0 0.0
  %788 = vmatpush1.msra.mxu0 0.0
  %789 = vmatprep.subr.mxu0 0.0
  %790 = vmatpush1.msra.mxu0 0.0
  %791 = vmatprep.subr.mxu0 0.0
  %792 = vmatpush1.msra.mxu0 0.0
  %793 = vmatprep.subr.mxu0 0.0
  %794 = vmatpush1.msra.mxu0 0.0
  %795 = vmatprep.subr.mxu0 0.0
  %796 = vmatpush1.msra.mxu0 0.0
  %797 = vmatprep.subr.mxu0 0.0
  %798 = vmatpush1.msra.mxu0 0.0
  %799 = vmatprep.subr.mxu0 0.0
  %800 = vmatpush1.msra.mxu0 0.0
  %801 = vmatprep.subr.mxu0 0.0
  %802 = vmatpush1.msra.mxu0 0.0
  %803 = vmatprep.subr.mxu0 0.0
  %804 = vmatpush1.msra.mxu0 0.0
  %805 = vmatprep.subr.mxu0 0.0
  %806 = vmatpush1.msra.mxu0 0.0
  %807 = vmatprep.mubr.f32.mxu0 0.0
  %808 = vmatmul.mubr.f32.gmra.mrb[0].mxu0 %v738
  %v809 = vpop.f32.mrb[0].mxu0
  %v810 = vadd.f32 0.0, %v809
  %v811 = vpop.f32.mrb[0].mxu0
  %812 = vmatprep.mubr.f32.mxu0 0.0
  %813 = vmatmul.mubr.f32.gmra.mrb[0].mxu0 %v741
  %v814 = vpop.f32.mrb[0].mxu0
  %v815 = vadd.f32 0.0, %v814
  %v816 = vpop.f32.mrb[0].mxu0
  %817 = vdwg.mxu0
  %v818 = vadd.f32 %v359, %v810
  %v819 = vadd.f32 %v360, %v815
  %v820 = vsel %vm84, %v818, 0.0
  %821 = vadd.xlane.f32.xlu0 %v820
  %v822 = vpop.xlane.xlu0 %821
  %v823 = vsel %vm84, %v819, 0.0
  %824 = vadd.xlane.f32.xlu0 %v823
  %v825 = vpop.xlane.xlu0 %824
  %v826 = vrcp.pop 32.0
  %v827 = vmul.f32 %v822, %v826
  %v828 = vmul.f32 %v825, %v826
  %v829 = vmul.f32 %v818, %v818
  %v830 = vmul.f32 %v819, %v819
  %v831 = vsel %vm84, %v829, 0.0
  %832 = vadd.xlane.f32.xlu0 %v831
  %v833 = vpop.xlane.xlu0 %832
  %v834 = vsel %vm84, %v830, 0.0
  %835 = vadd.xlane.f32.xlu0 %v834
  %v836 = vpop.xlane.xlu0 %835
  %v837 = vmul.f32 %v833, %v826
  %v838 = vmul.f32 %v836, %v826
  %v839 = vmul.f32 %v827, %v827
  %v840 = vmul.f32 %v828, %v828
  %v841 = vsub.f32 %v837, %v839
  %v842 = vsub.f32 %v838, %v840
  %v843 = vsub.f32 %v818, %v827
  %v844 = vsub.f32 %v819, %v828
  %v845 = vadd.f32 %v841, 1e-05
  %v846 = vadd.f32 %v842, 1e-05
  %v847 = vrsqrt.pop %v845
  %v848 = vrsqrt.pop %v846
  %v849 = vmul.f32 %v843, %v847
  %v850 = vmul.f32 %v844, %v848
  %853 = vrot.lane.b32.xlu0 %v818, 96
  %v854 = vpop.permute.xlu0 %853
  %855 = vrot.lane.b32.xlu0 %v819, 96
  %v856 = vpop.permute.xlu0 %855
  %v859 = vsel %vm84, %v854, 0.0
  %860 = vadd.xlane.f32.xlu0 %v859
  %v861 = vpop.xlane.xlu0 %860
  %v862 = vsel %vm84, %v856, 0.0
  %863 = vadd.xlane.f32.xlu0 %v862
  %v864 = vpop.xlane.xlu0 %863
  %v865 = vmul.f32 %v861, %v826
  %v866 = vmul.f32 %v864, %v826
  %869 = vrot.lane.b32.xlu0 %v829, 96
  %v870 = vpop.permute.xlu0 %869
  %871 = vrot.lane.b32.xlu0 %v830, 96
  %v872 = vpop.permute.xlu0 %871
  %v875 = vsel %vm84, %v870, 0.0
  %876 = vadd.xlane.f32.xlu0 %v875
  %v877 = vpop.xlane.xlu0 %876
  %v878 = vsel %vm84, %v872, 0.0
  %879 = vadd.xlane.f32.xlu0 %v878
  %v880 = vpop.xlane.xlu0 %879
  %v881 = vmul.f32 %v877, %v826
  %v882 = vmul.f32 %v880, %v826
  %v883 = vmul.f32 %v865, %v865
  %v884 = vmul.f32 %v866, %v866
  %v885 = vsub.f32 %v881, %v883
  %v886 = vsub.f32 %v882, %v884
  %v887 = vsub.f32 %v818, %v865
  %v888 = vsub.f32 %v819, %v866
  %v889 = vadd.f32 %v885, 1e-05
  %v890 = vadd.f32 %v886, 1e-05
  %v891 = vrsqrt.pop %v889
  %v892 = vrsqrt.pop %v890
  %v893 = vmul.f32 %v887, %v891
  %v894 = vmul.f32 %v888, %v892
  %v895 = vsel %vm84, %v849, %v893
  %v896 = vsel %vm84, %v850, %v894
  %v898 = vsel %vm361, %v895, 0
  %v901 = vsel %vm361, %v896, 0
  %903 = vmatprep.subr.mxu0 0.0
  %904 = vmatpush1.msra.mxu0 %v49
  %905 = vmatprep.subr.mxu0 0.0
  %906 = vmatpush1.msra.mxu0 %v50
  %907 = vmatprep.subr.mxu0 0.0
  %908 = vmatpush1.msra.mxu0 %v51
  %909 = vmatprep.subr.mxu0 0.0
  %910 = vmatpush1.msra.mxu0 %v52
  %911 = vmatprep.subr.mxu0 0.0
  %912 = vmatpush1.msra.mxu0 %v53
  %913 = vmatprep.subr.mxu0 0.0
  %914 = vmatpush1.msra.mxu0 %v54
  %915 = vmatprep.subr.mxu0 0.0
  %916 = vmatpush1.msra.mxu0 %v55
  %917 = vmatprep.subr.mxu0 0.0
  %918 = vmatpush1.msra.mxu0 %v56
  %919 = vmatprep.subr.mxu0 0.0
  %920 = vmatpush1.msra.mxu0 0.0
  %921 = vmatprep.subr.mxu0 0.0
  %922 = vmatpush1.msra.mxu0 0.0
  %923 = vmatprep.subr.mxu0 0.0
  %924 = vmatpush1.msra.mxu0 0.0
  %925 = vmatprep.subr.mxu0 0.0
  %926 = vmatpush1.msra.mxu0 0.0
  %927 = vmatprep.subr.mxu0 0.0
  %928 = vmatpush1.msra.mxu0 0.0
  %929 = vmatprep.subr.mxu0 0.0
  %930 = vmatpush1.msra.mxu0 0.0
  %931 = vmatprep.subr.mxu0 0.0
  %932 = vmatpush1.msra.mxu0 0.0
  %933 = vmatprep.subr.mxu0 0.0
  %934 = vmatpush1.msra.mxu0 0.0
  %935 = vmatprep.subr.mxu0 0.0
  %936 = vmatpush1.msra.mxu0 0.0
  %937 = vmatprep.subr.mxu0 0.0
  %938 = vmatpush1.msra.mxu0 0.0
  %939 = vmatprep.subr.mxu0 0.0
  %940 = vmatpush1.msra.mxu0 0.0
  %941 = vmatprep.subr.mxu0 0.0
  %942 = vmatpush1.msra.mxu0 0.0
  %943 = vmatprep.subr.mxu0 0.0
  %944 = vmatpush1.msra.mxu0 0.0
  %945 = vmatprep.subr.mxu0 0.0
  %946 = vmatpush1.msra.mxu0 0.0
  %947 = vmatprep.subr.mxu0 0.0
  %948 = vmatpush1.msra.mxu0 0.0
  %949 = vmatprep.subr.mxu0 0.0
  %950 = vmatpush1.msra.mxu0 0.0
  %951 = vmatprep.subr.mxu0 0.0
  %952 = vmatpush1.msra.mxu0 0.0
  %953 = vmatprep.subr.mxu0 0.0
  %954 = vmatpush1.msra.mxu0 0.0
  %955 = vmatprep.subr.mxu0 0.0
  %956 = vmatpush1.msra.mxu0 0.0
  %957 = vmatprep.subr.mxu0 0.0
  %958 = vmatpush1.msra.mxu0 0.0
  %959 = vmatprep.subr.mxu0 0.0
  %960 = vmatpush1.msra.mxu0 0.0
  %961 = vmatprep.subr.mxu0 0.0
  %962 = vmatpush1.msra.mxu0 0.0
  %963 = vmatprep.subr.mxu0 0.0
  %964 = vmatpush1.msra.mxu0 0.0
  %965 = vmatprep.subr.mxu0 0.0
  %966 = vmatpush1.msra.mxu0 0.0
  %967 = vmatprep.mubr.f32.mxu0 0.0
  %968 = vmatmul.mubr.f32.gmra.mrb[0].mxu0 %v898
  %v969 = vpop.f32.mrb[0].mxu0
  %v970 = vadd.f32 %v57, %v969
  %v971 = vpop.f32.mrb[0].mxu0
  %972 = vmatprep.mubr.f32.mxu0 0.0
  %973 = vmatmul.mubr.f32.gmra.mrb[0].mxu0 %v901
  %v974 = vpop.f32.mrb[0].mxu0
  %v975 = vadd.f32 %v57, %v974
  %v976 = vpop.f32.mrb[0].mxu0
  %977 = vdwg.mxu0
  %v978 = vmax.f32 %v970, 0.0
  %v979 = vmax.f32 %v975, 0.0
  %980 = vmatprep.subr.mxu0 0.0
  %981 = vmatpush1.msra.mxu0 %v58
  %982 = vmatprep.subr.mxu0 0.0
  %983 = vmatpush1.msra.mxu0 %v59
  %984 = vmatprep.subr.mxu0 0.0
  %985 = vmatpush1.msra.mxu0 %v60
  %986 = vmatprep.subr.mxu0 0.0
  %987 = vmatpush1.msra.mxu0 %v61
  %988 = vmatprep.subr.mxu0 0.0
  %989 = vmatpush1.msra.mxu0 %v62
  %990 = vmatprep.subr.mxu0 0.0
  %991 = vmatpush1.msra.mxu0 %v63
  %992 = vmatprep.subr.mxu0 0.0
  %993 = vmatpush1.msra.mxu0 %v64
  %994 = vmatprep.subr.mxu0 0.0
  %995 = vmatpush1.msra.mxu0 %v65
  %996 = vmatprep.subr.mxu0 0.0
  %997 = vmatpush1.msra.mxu0 %v66
  %998 = vmatprep.subr.mxu0 0.0
  %999 = vmatpush1.msra.mxu0 %v67
  %1000 = vmatprep.subr.mxu0 0.0
  %1001 = vmatpush1.msra.mxu0 %v68
  %1002 = vmatprep.subr.mxu0 0.0
  %1003 = vmatpush1.msra.mxu0 %v69
  %1004 = vmatprep.subr.mxu0 0.0
  %1005 = vmatpush1.msra.mxu0 %v70
  %1006 = vmatprep.subr.mxu0 0.0
  %1007 = vmatpush1.msra.mxu0 %v71
  %1008 = vmatprep.subr.mxu0 0.0
  %1009 = vmatpush1.msra.mxu0 %v72
  %1010 = vmatprep.subr.mxu0 0.0
  %1011 = vmatpush1.msra.mxu0 %v73
  %1012 = vmatprep.subr.mxu0 0.0
  %1013 = vmatpush1.msra.mxu0 0.0
  %1014 = vmatprep.subr.mxu0 0.0
  %1015 = vmatpush1.msra.mxu0 0.0
  %1016 = vmatprep.subr.mxu0 0.0
  %1017 = vmatpush1.msra.mxu0 0.0
  %1018 = vmatprep.subr.mxu0 0.0
  %1019 = vmatpush1.msra.mxu0 0.0
  %1020 = vmatprep.subr.mxu0 0.0
  %1021 = vmatpush1.msra.mxu0 0.0
  %1022 = vmatprep.subr.mxu0 0.0
  %1023 = vmatpush1.msra.mxu0 0.0
  %1024 = vmatprep.subr.mxu0 0.0
  %1025 = vmatpush1.msra.mxu0 0.0
  %1026 = vmatprep.subr.mxu0 0.0
  %1027 = vmatpush1.msra.mxu0 0.0
  %1028 = vmatprep.subr.mxu0 0.0
  %1029 = vmatpush1.msra.mxu0 0.0
  %1030 = vmatprep.subr.mxu0 0.0
  %1031 = vmatpush1.msra.mxu0 0.0
  %1032 = vmatprep.subr.mxu0 0.0
  %1033 = vmatpush1.msra.mxu0 0.0
  %1034 = vmatprep.subr.mxu0 0.0
  %1035 = vmatpush1.msra.mxu0 0.0
  %1036 = vmatprep.subr.mxu0 0.0
  %1037 = vmatpush1.msra.mxu0 0.0
  %1038 = vmatprep.subr.mxu0 0.0
  %1039 = vmatpush1.msra.mxu0 0.0
  %1040 = vmatprep.subr.mxu0 0.0
  %1041 = vmatpush1.msra.mxu0 0.0
  %1042 = vmatprep.subr.mxu0 0.0
  %1043 = vmatpush1.msra.mxu0 0.0
  %1044 = vmatprep.mubr.f32.mxu0 0.0
  %1045 = vmatmul.mubr.f32.gmra.mrb[0].mxu0 %v978
  %v1046 = vpop.f32.mrb[0].mxu0
  %v1047 = vadd.f32 0.0, %v1046
  %v1048 = vpop.f32.mrb[0].mxu0
  %1049 = vmatprep.mubr.f32.mxu0 0.0
  %1050 = vmatmul.mubr.f32.gmra.mrb[0].mxu0 %v979
  %v1051 = vpop.f32.mrb[0].mxu0
  %v1052 = vadd.f32 0.0, %v1051
  %v1053 = vpop.f32.mrb[0].mxu0
  %1054 = vdwg.mxu0
  %v1055 = vadd.f32 %v895, %v1047
  %v1056 = vadd.f32 %v896, %v1052
  %v1057 = vadd.f32 %v1055, %v74
  %v1058 = vadd.f32 %v1056, %v74
  %v1059 = vsel %vm84, %v1057, 0.0
  %1060 = vadd.xlane.f32.xlu0 %v1059
  %v1061 = vpop.xlane.xlu0 %1060
  %v1062 = vsel %vm84, %v1058, 0.0
  %1063 = vadd.xlane.f32.xlu0 %v1062
  %v1064 = vpop.xlane.xlu0 %1063
  %v1065 = vmul.f32 %v1061, %v826
  %v1066 = vmul.f32 %v1064, %v826
  %v1067 = vmul.f32 %v1057, %v1057
  %v1068 = vmul.f32 %v1058, %v1058
  %v1069 = vsel %vm84, %v1067, 0.0
  %1070 = vadd.xlane.f32.xlu0 %v1069
  %v1071 = vpop.xlane.xlu0 %1070
  %v1072 = vsel %vm84, %v1068, 0.0
  %1073 = vadd.xlane.f32.xlu0 %v1072
  %v1074 = vpop.xlane.xlu0 %1073
  %v1075 = vmul.f32 %v1071, %v826
  %v1076 = vmul.f32 %v1074, %v826
  %v1077 = vmul.f32 %v1065, %v1065
  %v1078 = vmul.f32 %v1066, %v1066
  %v1079 = vsub.f32 %v1075, %v1077
  %v1080 = vsub.f32 %v1076, %v1078
  %v1081 = vsub.f32 %v1057, %v1065
  %v1082 = vsub.f32 %v1058, %v1066
  %v1083 = vadd.f32 %v1079, 1e-05
  %v1084 = vadd.f32 %v1080, 1e-05
  %v1085 = vrsqrt.pop %v1083
  %v1086 = vrsqrt.pop %v1084
  %v1087 = vmul.f32 %v1081, %v1085
  %v1088 = vmul.f32 %v1082, %v1086
  %1091 = vrot.lane.b32.xlu0 %v1057, 96
  %v1092 = vpop.permute.xlu0 %1091
  %1093 = vrot.lane.b32.xlu0 %v1058, 96
  %v1094 = vpop.permute.xlu0 %1093
  %v1097 = vsel %vm84, %v1092, 0.0
  %1098 = vadd.xlane.f32.xlu0 %v1097
  %v1099 = vpop.xlane.xlu0 %1098
  %v1100 = vsel %vm84, %v1094, 0.0
  %1101 = vadd.xlane.f32.xlu0 %v1100
  %v1102 = vpop.xlane.xlu0 %1101
  %v1103 = vmul.f32 %v1099, %v826
  %v1104 = vmul.f32 %v1102, %v826
  %1107 = vrot.lane.b32.xlu0 %v1067, 96
  %v1108 = vpop.permute.xlu0 %1107
  %1109 = vrot.lane.b32.xlu0 %v1068, 96
  %v1110 = vpop.permute.xlu0 %1109
  %v1113 = vsel %vm84, %v1108, 0.0
  %1114 = vadd.xlane.f32.xlu0 %v1113
  %v1115 = vpop.xlane.xlu0 %1114
  %v1116 = vsel %vm84, %v1110, 0.0
  %1117 = vadd.xlane.f32.xlu0 %v1116
  %v1118 = vpop.xlane.xlu0 %1117
  %v1119 = vmul.f32 %v1115, %v826
  %v1120 = vmul.f32 %v1118, %v826
  %v1121 = vmul.f32 %v1103, %v1103
  %v1122 = vmul.f32 %v1104, %v1104
  %v1123 = vsub.f32 %v1119, %v1121
  %v1124 = vsub.f32 %v1120, %v1122
  %v1125 = vsub.f32 %v1057, %v1103
  %v1126 = vsub.f32 %v1058, %v1104
  %v1127 = vadd.f32 %v1123, 1e-05
  %v1128 = vadd.f32 %v1124, 1e-05
  %v1129 = vrsqrt.pop %v1127
  %v1130 = vrsqrt.pop %v1128
  %v1131 = vmul.f32 %v1125, %v1129
  %v1132 = vmul.f32 %v1126, %v1130
  %v1133 = vsel %vm84, %v1087, %v1131
  %v1134 = vsel %vm84, %v1088, %v1132
  %v1136 = vsel %vm361, %v1133, 0
  %v1139 = vsel %vm361, %v1134, 0
  %1141 = vmatprep.subr.mxu0 0.0
  %1142 = vmatpush1.msra.mxu0 %v75
  %1143 = vmatprep.subr.mxu0 0.0
  %1144 = vmatpush1.msra.mxu0 %v76
  %1145 = vmatprep.subr.mxu0 0.0
  %1146 = vmatpush1.msra.mxu0 %v77
  %1147 = vmatprep.subr.mxu0 0.0
  %1148 = vmatpush1.msra.mxu0 %v78
  %1149 = vmatprep.subr.mxu0 0.0
  %1150 = vmatpush1.msra.mxu0 %v79
  %1151 = vmatprep.subr.mxu0 0.0
  %1152 = vmatpush1.msra.mxu0 %v80
  %1153 = vmatprep.subr.mxu0 0.0
  %1154 = vmatpush1.msra.mxu0 %v81
  %1155 = vmatprep.subr.mxu0 0.0
  %1156 = vmatpush1.msra.mxu0 %v82
  %1157 = vmatprep.subr.mxu0 0.0
  %1158 = vmatpush1.msra.mxu0 0.0
  %1159 = vmatprep.subr.mxu0 0.0
  %1160 = vmatpush1.msra.mxu0 0.0
  %1161 = vmatprep.subr.mxu0 0.0
  %1162 = vmatpush1.msra.mxu0 0.0
  %1163 = vmatprep.subr.mxu0 0.0
  %1164 = vmatpush1.msra.mxu0 0.0
  %1165 = vmatprep.subr.mxu0 0.0
  %1166 = vmatpush1.msra.mxu0 0.0
  %1167 = vmatprep.subr.mxu0 0.0
  %1168 = vmatpush1.msra.mxu0 0.0
  %1169 = vmatprep.subr.mxu0 0.0
  %1170 = vmatpush1.msra.mxu0 0.0
  %1171 = vmatprep.subr.mxu0 0.0
  %1172 = vmatpush1.msra.mxu0 0.0
  %1173 = vmatprep.subr.mxu0 0.0
  %1174 = vmatpush1.msra.mxu0 0.0
  %1175 = vmatprep.subr.mxu0 0.0
  %1176 = vmatpush1.msra.mxu0 0.0
  %1177 = vmatprep.subr.mxu0 0.0
  %1178 = vmatpush1.msra.mxu0 0.0
  %1179 = vmatprep.subr.mxu0 0.0
  %1180 = vmatpush1.msra.mxu0 0.0
  %1181 = vmatprep.subr.mxu0 0.0
  %1182 = vmatpush1.msra.mxu0 0.0
  %1183 = vmatprep.subr.mxu0 0.0
  %1184 = vmatpush1.msra.mxu0 0.0
  %1185 = vmatprep.subr.mxu0 0.0
  %1186 = vmatpush1.msra.mxu0 0.0
  %1187 = vmatprep.subr.mxu0 0.0
  %1188 = vmatpush1.msra.mxu0 0.0
  %1189 = vmatprep.subr.mxu0 0.0
  %1190 = vmatpush1.msra.mxu0 0.0
  %1191 = vmatprep.subr.mxu0 0.0
  %1192 = vmatpush1.msra.mxu0 0.0
  %1193 = vmatprep.subr.mxu0 0.0
  %1194 = vmatpush1.msra.mxu0 0.0
  %1195 = vmatprep.subr.mxu0 0.0
  %1196 = vmatpush1.msra.mxu0 0.0
  %1197 = vmatprep.subr.mxu0 0.0
  %1198 = vmatpush1.msra.mxu0 0.0
  %1199 = vmatprep.subr.mxu0 0.0
  %1200 = vmatpush1.msra.mxu0 0.0
  %1201 = vmatprep.subr.mxu0 0.0
  %1202 = vmatpush1.msra.mxu0 0.0
  %1203 = vmatprep.subr.mxu0 0.0
  %1204 = vmatpush1.msra.mxu0 0.0
  %1205 = vmatprep.mubr.f32.mxu0 0.0
  %1206 = vmatmul.mubr.f32.gmra.mrb[0].mxu0 %v1136
  %v1207 = vpop.f32.mrb[0].mxu0
  %v1208 = vadd.f32 %v83, %v1207
  %v1209 = vpop.f32.mrb[0].mxu0
  %1210 = vmatprep.mubr.f32.mxu0 0.0
  %1211 = vmatmul.mubr.f32.gmra.mrb[0].mxu0 %v1139
  %v1212 = vpop.f32.mrb[0].mxu0
  %v1213 = vadd.f32 %v83, %v1212
  %v1214 = vpop.f32.mrb[0].mxu0
  %1215 = vdwg.mxu0
  %v1216 = vsel %vm187, %v1208, -inf
  %1217 = vmax.xlane.f32.xlu0 %v1216
  %v1218 = vpop.xlane.xlu0 %1217
  %v1219 = vsel %vm187, %v1213, -inf
  %1220 = vmax.xlane.f32.xlu0 %v1219
  %v1221 = vpop.xlane.xlu0 %1220
  %vm1222 = vcmp.ge.f32.partialorder %v1208, %v1218
  %vm1223 = vcmp.ge.f32.partialorder %v1213, %v1221
  %v1224 = vsel %vm1222, %v205, 10
  %v1225 = vsel %vm1223, %v205, 10
  %v1226 = vsel %vm187, %v1224, 2147483647
  %v1227 = vand.u32 %v1226, 65535
  %v1228 = vshra.s32 %v1226, 16
  %v1229 = vcvt.s32.f32 %v1227
  %v1230 = vcvt.s32.f32 %v1228
  %1231 = vmin.xlane.f32.xlu0 %v1230
  %v1232 = vpop.xlane.xlu0 %1231
  %vm1233 = vcmp.eq.f32.partialorder %v1230, %v1232
  %v1234 = vsel %vm1233, %v1229, inf
  %1235 = vmin.xlane.f32.xlu0 %v1234
  %v1236 = vpop.xlane.xlu0 %1235
  %v1237 = vcvt.f32.s32 %v1236
  %v1238 = vcvt.f32.s32 %v1232
  %v1239 = vshll.u32 %v1238, 16
  %v1240 = vadd.s32 %v1239, %v1237
  %v1241 = vsel %vm187, %v1225, 2147483647
  %v1242 = vand.u32 %v1241, 65535
  %v1243 = vshra.s32 %v1241, 16
  %v1244 = vcvt.s32.f32 %v1242
  %v1245 = vcvt.s32.f32 %v1243
  %1246 = vmin.xlane.f32.xlu0 %v1245
  %v1247 = vpop.xlane.xlu0 %1246
  %vm1248 = vcmp.eq.f32.partialorder %v1245, %v1247
  %v1249 = vsel %vm1248, %v1244, inf
  %1250 = vmin.xlane.f32.xlu0 %v1249
  %v1251 = vpop.xlane.xlu0 %1250
  %v1252 = vcvt.f32.s32 %v1251
  %v1253 = vcvt.f32.s32 %v1247
  %v1254 = vshll.u32 %v1253, 16
  %v1255 = vadd.s32 %v1254, %v1252
  %v1256 = vsel %vm242, 0, %v1240
  %v1257 = vsel %vm243, 0, %v1255
  %v1258 = vsel %vm250, %v1256, %v244
  %v1259 = vsel %vm251, %v1257, %v245
  %1260 = vst [vmem:[%s2] sm:$0xff] 0.0
  %1261 = vst [vmem:[%s2 + $0x8] sm:$0xff] 0.0
  %1264 = vrot.lane.b32.xlu0 %v196, 96
  %v1265 = vpop.permute.xlu0 %1264
  %1266 = vrot.lane.b32.xlu0 %v197, 96
  %v1267 = vpop.permute.xlu0 %1266
  %1270 = vst.msk [vmem:[%s2] sm:$0xff] %vm187, %v1265
  %1271 = vst.msk [vmem:[%s2 + $0x8] sm:$0xff] %vm187, %v1267
  %v1272 = vcvt.s32.f32 %v244
  %v1273 = vcvt.s32.f32 %v245
  %1276 = vrot.lane.b32.xlu0 %v1272, 112
  %v1277 = vpop.permute.xlu0 %1276
  %1278 = vrot.lane.b32.xlu0 %v1273, 112
  %v1279 = vpop.permute.xlu0 %1278
  %vm1282 = vcmask 138368
  %1283 = vst.msk [vmem:[%s2] sm:$0xff] %vm1282, %v1277
  %1284 = vst.msk [vmem:[%s2 + $0x8] sm:$0xff] %vm1282, %v1279
  %v1285 = vcvt.s32.f32 %v1258
  %v1286 = vcvt.s32.f32 %v1259
  %1289 = vrot.lane.b32.xlu0 %v1285, 113
  %v1290 = vpop.permute.xlu0 %1289
  %1291 = vrot.lane.b32.xlu0 %v1286, 113
  %v1292 = vpop.permute.xlu0 %1291
  %vm1295 = vcmask 146568
  %1296 = vst.msk [vmem:[%s2] sm:$0xff] %vm1295, %v1290
  %1297 = vst.msk [vmem:[%s2 + $0x8] sm:$0xff] %vm1295, %v1292
  // Predicated region
  $region10: #{posterior_n_forward.1} parent=0 // pred_check
    _
  $region11: #{posterior_n_forward.1} parent=0 // pred_check_branch
    %1299 = sbr.rel (0) target = $region13
  $region12: #{posterior_n_forward.1} parent=0 // pred_region
    _
  $region13: #{posterior_n_forward.1} parent=0 // pred_fallthru
    _
  // Predicated region
  $region14: #{posterior_n_forward.1} parent=0 // pred_check
    _
  $region15: #{posterior_n_forward.1} parent=0 // pred_check_branch
    %1301 = sbr.rel (0) target = $region17
  $region16: #{posterior_n_forward.1} parent=0 // pred_region
    _
  $region17: #{posterior_n_forward.1} parent=0 // pred_fallthru
    _

</llo_original>
